<compile_context>
chip_gen: v6e
topology: v6e:2x2x1
jax: 0.10.0
libtpu: 0.0.40
codegen_flags: <defaults>
</compile_context>

<pallas_src>
import functools

import jax
import jax.numpy as jnp
from jax.experimental import pallas as pl
from jax.experimental.pallas import tpu as pltpu

EPS = 1e-5
NEG_SLOPE = 0.2


def _fused_kernel(x_ref, w_ref, g_ref, b_ref, o_ref, *, taps, hw, nb):
    # x_ref: (NB, T, Cin, L)   bf16  input slabs (lane axis = flattened spatial)
    # w_ref: (K*K, Cout, Cin)  bf16  per-tap conv weights
    # g_ref: (Cout, 1)         f32   InstanceNorm gamma
    # b_ref: (Cout, 1)         f32   InstanceNorm beta
    # o_ref: (NB, Cout, HW)    f32   fused output (channel-major, HW lane-dense)
    gamma = g_ref[...]
    beta = b_ref[...]
    inv_hw = 1.0 / float(hw)
    for n in range(nb):
        # Conv as K*K accumulated (Cout,Cin) x (Cin,HW) MXU matmuls, f32 accumulation.
        acc = None
        for i, (slab, off) in enumerate(taps):
            lhs = w_ref[i]                            # (Cout, Cin) bf16
            rhs = x_ref[n, slab, :, off:off + hw]     # (Cin, HW)   bf16
            part = jnp.dot(lhs, rhs, preferred_element_type=jnp.float32)
            acc = part if acc is None else acc + part

        # InstanceNorm2d: per-(n, c) biased stats over the spatial (lane) axis.
        mean = jnp.sum(acc, axis=1, keepdims=True) * inv_hw      # (Cout, 1)
        d = acc - mean                                           # centered, reused
        var = jnp.sum(d * d, axis=1, keepdims=True) * inv_hw     # (Cout, 1)
        scale = jax.lax.rsqrt(var + EPS) * gamma                 # (Cout, 1)
        z = d * scale + beta

        # LeakyReLU(0.2)
        o_ref[n] = jnp.where(z >= 0, z, NEG_SLOPE * z)


def leaky_relu_ins_conv2d(x, weight, gamma, beta, *, stride, padding):
    """x: [N, Cin, H, W]; weight: [Cout, Cin, K, K]; gamma/beta: [Cout].
    Returns [N, Cout, Ho, Wo] (NCHW), matching the PyTorch module."""
    N, Cin, H, W = x.shape
    Cout, _, K, _ = weight.shape
    Ho = (H + 2 * padding - K) // stride + 1
    Wo = (W + 2 * padding - K) // stride + 1
    HW = Ho * Wo
    Hp = H + 2 * padding

    xp = jnp.pad(x.astype(jnp.float32),
                 ((0, 0), (0, 0), (padding, padding), (padding, padding)))

    if stride == 1:
        # Width-only im2col: K slabs, each (N, Cin, Hp*Wo).  Conv tap (kh, kw)
        # is the contiguous lane slice [kh*Wo : kh*Wo + HW] of slab kw.
        slabs = [xp[:, :, :, kw:kw + Wo].reshape(N, Cin, Hp * Wo)
                 for kw in range(K)]
        taps = [(kw, kh * Wo) for kh in range(K) for kw in range(K)]
        L = Hp * Wo
    else:
        # General stride: one exactly-(Cin, HW) slab per tap (kh-major, kw-minor).
        slabs = []
        for kh in range(K):
            for kw in range(K):
                s = xp[:, :, kh:kh + (Ho - 1) * stride + 1:stride,
                             kw:kw + (Wo - 1) * stride + 1:stride]
                slabs.append(s.reshape(N, Cin, HW))
        taps = [(t, 0) for t in range(K * K)]
        L = HW
    xcols = jnp.stack(slabs, axis=1).astype(jnp.bfloat16)    # (N, T, Cin, L)
    T = xcols.shape[1]

    # Per-tap weights: (K*K, Cout, Cin); tap index = kh*K + kw (matches `taps`).
    w_taps = jnp.transpose(weight, (2, 3, 0, 1)).reshape(K * K, Cout, Cin)
    w_taps = w_taps.astype(jnp.bfloat16)
    g2 = gamma.reshape(Cout, 1).astype(jnp.float32)
    b2 = beta.reshape(Cout, 1).astype(jnp.float32)

    # Batch block: fuse the whole (small) batch into one grid step when it fits
    # comfortably in VMEM; otherwise tile the batch (marked "parallel").
    bytes_per_n = T * Cin * L * 2 + Cout * HW * 4
    nb = N if N * bytes_per_n <= 8 * 1024 * 1024 else 1
    while N % nb != 0:
        nb -= 1

    kernel = functools.partial(_fused_kernel, taps=taps, hw=HW, nb=nb)
    out = pl.pallas_call(
        kernel,
        out_shape=jax.ShapeDtypeStruct((N, Cout, HW), jnp.float32),
        grid_spec=pltpu.PrefetchScalarGridSpec(
            num_scalar_prefetch=0,
            grid=(N // nb,),
            in_specs=[
                pl.BlockSpec((nb, T, Cin, L), lambda i: (i, 0, 0, 0)),
                pl.BlockSpec((K * K, Cout, Cin), lambda i: (0, 0, 0)),
                pl.BlockSpec((Cout, 1), lambda i: (0, 0)),
                pl.BlockSpec((Cout, 1), lambda i: (0, 0)),
            ],
            out_specs=pl.BlockSpec((nb, Cout, HW), lambda i: (i, 0, 0)),
        ),
        compiler_params=pltpu.CompilerParams(
            dimension_semantics=("parallel",)),
    )(xcols, w_taps, g2, b2)

    # (N, Cout, Ho*Wo) is already channel-major -> free reshape to NCHW.
    return out.reshape(N, Cout, Ho, Wo)


if __name__ == "__main__":
    # Module config: LeakyReLUINSConv2d(n_in=4, n_out=8, kernel_size=3, stride=1, padding=1)
    n_in, n_out, kernel_size, stride, padding = 4, 8, 3, 1, 1
    N, H, W = 2, 16, 16

    key = jax.random.PRNGKey(0)
    kx, kw = jax.random.split(key)
    x = jax.random.normal(kx, (N, n_in, H, W), dtype=jnp.float32)

    # Deterministic parameter init (shapes from nn.Conv2d / nn.InstanceNorm2d).
    fan_in = n_in * kernel_size * kernel_size
    bound = 1.0 / (fan_in ** 0.5)
    weight = jax.random.uniform(kw, (n_out, n_in, kernel_size, kernel_size),
                                dtype=jnp.float32, minval=-bound, maxval=bound)
    gamma = jnp.ones((n_out,), dtype=jnp.float32)   # InstanceNorm2d affine init
    beta = jnp.zeros((n_out,), dtype=jnp.float32)

    y = leaky_relu_ins_conv2d(x, weight, gamma, beta, stride=stride, padding=padding)
    jax.block_until_ready(y)
    assert y.shape == (N, n_out, H, W), y.shape

    # Pure-JAX f32 reference sanity check (kernel matmul runs in bf16).
    conv = jax.lax.conv_general_dilated(
        x, weight, window_strides=(stride, stride),
        padding=[(padding, padding), (padding, padding)],
        dimension_numbers=("NCHW", "OIHW", "NCHW"),
        precision=jax.lax.Precision.HIGHEST)
    mean = conv.mean(axis=(2, 3), keepdims=True)
    var = ((conv - mean) ** 2).mean(axis=(2, 3), keepdims=True)
    zn = (conv - mean) * jax.lax.rsqrt(var + EPS)
    zn = zn * gamma.reshape(1, -1, 1, 1) + beta.reshape(1, -1, 1, 1)
    ref = jnp.where(zn >= 0, zn, NEG_SLOPE * zn)
    max_err = float(jnp.max(jnp.abs(y - ref)))
    assert max_err < 0.15, f"max abs error vs f32 reference: {max_err}"
    print("KERNEL_OK")
</pallas_src>

<mosaic_0001>
module attributes {stable_mosaic.version = 11 : i64} {
  func.func @_fused_kernel(%arg0: i32, %arg1: memref<2x3x4x288xbf16, #tpu.memory_space<vmem>>, %arg2: memref<9x8x4xbf16, #tpu.memory_space<vmem>>, %arg3: memref<8x1xf32, #tpu.memory_space<vmem>>, %arg4: memref<8x1xf32, #tpu.memory_space<vmem>>, %arg5: memref<2x8x256xf32, #tpu.memory_space<vmem>>) attributes {dimension_semantics = [#tpu.dimension_semantics<parallel>], iteration_bounds = array<i64: 1>, scalar_prefetch = 0 : i64, scratch_operands = 0 : i64, tpu.core_type = #tpu.core_type<tc>, window_params = [{transform_indices = @transform_0, window_bounds = array<i64: 2, 3, 4, 288>}, {pipeline_mode = #tpu.pipeline_mode<synchronous>, transform_indices = @transform_1, window_bounds = array<i64: 9, 8, 4>}, {pipeline_mode = #tpu.pipeline_mode<synchronous>, transform_indices = @transform_2, window_bounds = array<i64: 8, 1>}, {pipeline_mode = #tpu.pipeline_mode<synchronous>, transform_indices = @transform_3, window_bounds = array<i64: 8, 1>}, {transform_indices = @transform_4, window_bounds = array<i64: 2, 8, 256>}]} {
    %c0 = arith.constant 0 : index
    %c0_0 = arith.constant 0 : index
    %0 = vector.load %arg3[%c0, %c0_0] : memref<8x1xf32, #tpu.memory_space<vmem>>, vector<8x1xf32>
    %c0_1 = arith.constant 0 : index
    %c0_2 = arith.constant 0 : index
    %1 = vector.load %arg4[%c0_1, %c0_2] : memref<8x1xf32, #tpu.memory_space<vmem>>, vector<8x1xf32>
    %c0_3 = arith.constant 0 : index
    %c0_4 = arith.constant 0 : index
    %c0_5 = arith.constant 0 : index
    %2 = vector.load %arg2[%c0_3, %c0_4, %c0_5] : memref<9x8x4xbf16, #tpu.memory_space<vmem>>, vector<1x8x4xbf16>
    %3 = vector.shape_cast %2 : vector<1x8x4xbf16> to vector<8x4xbf16>
    %c0_6 = arith.constant 0 : index
    %c0_7 = arith.constant 0 : index
    %c0_8 = arith.constant 0 : index
    %c0_9 = arith.constant 0 : index
    %4 = vector.load %arg1[%c0_6, %c0_7, %c0_8, %c0_9] : memref<2x3x4x288xbf16, #tpu.memory_space<vmem>>, vector<1x1x4x256xbf16>
    %5 = vector.shape_cast %4 : vector<1x1x4x256xbf16> to vector<4x256xbf16>
    %cst = arith.constant dense<0.000000e+00> : vector<8x256xf32>
    %6 = tpu.matmul %3, %5, %cst {dimension_numbers = #tpu.dot_dimension_numbers<[1], [0], [0], [1], [0, 0, 1, 1], [], []>} : vector<8x4xbf16>, vector<4x256xbf16>, vector<8x256xf32> -> vector<8x256xf32>
    %c1 = arith.constant 1 : index
    %c0_10 = arith.constant 0 : index
    %c0_11 = arith.constant 0 : index
    %7 = vector.load %arg2[%c1, %c0_10, %c0_11] : memref<9x8x4xbf16, #tpu.memory_space<vmem>>, vector<1x8x4xbf16>
    %8 = vector.shape_cast %7 : vector<1x8x4xbf16> to vector<8x4xbf16>
    %c0_12 = arith.constant 0 : index
    %c1_13 = arith.constant 1 : index
    %c0_14 = arith.constant 0 : index
    %c0_15 = arith.constant 0 : index
    %9 = vector.load %arg1[%c0_12, %c1_13, %c0_14, %c0_15] : memref<2x3x4x288xbf16, #tpu.memory_space<vmem>>, vector<1x1x4x256xbf16>
    %10 = vector.shape_cast %9 : vector<1x1x4x256xbf16> to vector<4x256xbf16>
    %cst_16 = arith.constant dense<0.000000e+00> : vector<8x256xf32>
    %11 = tpu.matmul %8, %10, %cst_16 {dimension_numbers = #tpu.dot_dimension_numbers<[1], [0], [0], [1], [0, 0, 1, 1], [], []>} : vector<8x4xbf16>, vector<4x256xbf16>, vector<8x256xf32> -> vector<8x256xf32>
    %12 = arith.addf %6, %11 : vector<8x256xf32>
    %c2 = arith.constant 2 : index
    %c0_17 = arith.constant 0 : index
    %c0_18 = arith.constant 0 : index
    %13 = vector.load %arg2[%c2, %c0_17, %c0_18] : memref<9x8x4xbf16, #tpu.memory_space<vmem>>, vector<1x8x4xbf16>
    %14 = vector.shape_cast %13 : vector<1x8x4xbf16> to vector<8x4xbf16>
    %c0_19 = arith.constant 0 : index
    %c2_20 = arith.constant 2 : index
    %c0_21 = arith.constant 0 : index
    %c0_22 = arith.constant 0 : index
    %15 = vector.load %arg1[%c0_19, %c2_20, %c0_21, %c0_22] : memref<2x3x4x288xbf16, #tpu.memory_space<vmem>>, vector<1x1x4x256xbf16>
    %16 = vector.shape_cast %15 : vector<1x1x4x256xbf16> to vector<4x256xbf16>
    %cst_23 = arith.constant dense<0.000000e+00> : vector<8x256xf32>
    %17 = tpu.matmul %14, %16, %cst_23 {dimension_numbers = #tpu.dot_dimension_numbers<[1], [0], [0], [1], [0, 0, 1, 1], [], []>} : vector<8x4xbf16>, vector<4x256xbf16>, vector<8x256xf32> -> vector<8x256xf32>
    %18 = arith.addf %12, %17 : vector<8x256xf32>
    %c3 = arith.constant 3 : index
    %c0_24 = arith.constant 0 : index
    %c0_25 = arith.constant 0 : index
    %19 = vector.load %arg2[%c3, %c0_24, %c0_25] : memref<9x8x4xbf16, #tpu.memory_space<vmem>>, vector<1x8x4xbf16>
    %20 = vector.shape_cast %19 : vector<1x8x4xbf16> to vector<8x4xbf16>
    %c0_26 = arith.constant 0 : index
    %c0_27 = arith.constant 0 : index
    %c0_28 = arith.constant 0 : index
    %c16 = arith.constant 16 : index
    %21 = vector.load %arg1[%c0_26, %c0_27, %c0_28, %c16] : memref<2x3x4x288xbf16, #tpu.memory_space<vmem>>, vector<1x1x4x256xbf16>
    %22 = vector.shape_cast %21 : vector<1x1x4x256xbf16> to vector<4x256xbf16>
    %cst_29 = arith.constant dense<0.000000e+00> : vector<8x256xf32>
    %23 = tpu.matmul %20, %22, %cst_29 {dimension_numbers = #tpu.dot_dimension_numbers<[1], [0], [0], [1], [0, 0, 1, 1], [], []>} : vector<8x4xbf16>, vector<4x256xbf16>, vector<8x256xf32> -> vector<8x256xf32>
    %24 = arith.addf %18, %23 : vector<8x256xf32>
    %c4 = arith.constant 4 : index
    %c0_30 = arith.constant 0 : index
    %c0_31 = arith.constant 0 : index
    %25 = vector.load %arg2[%c4, %c0_30, %c0_31] : memref<9x8x4xbf16, #tpu.memory_space<vmem>>, vector<1x8x4xbf16>
    %26 = vector.shape_cast %25 : vector<1x8x4xbf16> to vector<8x4xbf16>
    %c0_32 = arith.constant 0 : index
    %c1_33 = arith.constant 1 : index
    %c0_34 = arith.constant 0 : index
    %c16_35 = arith.constant 16 : index
    %27 = vector.load %arg1[%c0_32, %c1_33, %c0_34, %c16_35] : memref<2x3x4x288xbf16, #tpu.memory_space<vmem>>, vector<1x1x4x256xbf16>
    %28 = vector.shape_cast %27 : vector<1x1x4x256xbf16> to vector<4x256xbf16>
    %cst_36 = arith.constant dense<0.000000e+00> : vector<8x256xf32>
    %29 = tpu.matmul %26, %28, %cst_36 {dimension_numbers = #tpu.dot_dimension_numbers<[1], [0], [0], [1], [0, 0, 1, 1], [], []>} : vector<8x4xbf16>, vector<4x256xbf16>, vector<8x256xf32> -> vector<8x256xf32>
    %30 = arith.addf %24, %29 : vector<8x256xf32>
    %c5 = arith.constant 5 : index
    %c0_37 = arith.constant 0 : index
    %c0_38 = arith.constant 0 : index
    %31 = vector.load %arg2[%c5, %c0_37, %c0_38] : memref<9x8x4xbf16, #tpu.memory_space<vmem>>, vector<1x8x4xbf16>
    %32 = vector.shape_cast %31 : vector<1x8x4xbf16> to vector<8x4xbf16>
    %c0_39 = arith.constant 0 : index
    %c2_40 = arith.constant 2 : index
    %c0_41 = arith.constant 0 : index
    %c16_42 = arith.constant 16 : index
    %33 = vector.load %arg1[%c0_39, %c2_40, %c0_41, %c16_42] : memref<2x3x4x288xbf16, #tpu.memory_space<vmem>>, vector<1x1x4x256xbf16>
    %34 = vector.shape_cast %33 : vector<1x1x4x256xbf16> to vector<4x256xbf16>
    %cst_43 = arith.constant dense<0.000000e+00> : vector<8x256xf32>
    %35 = tpu.matmul %32, %34, %cst_43 {dimension_numbers = #tpu.dot_dimension_numbers<[1], [0], [0], [1], [0, 0, 1, 1], [], []>} : vector<8x4xbf16>, vector<4x256xbf16>, vector<8x256xf32> -> vector<8x256xf32>
    %36 = arith.addf %30, %35 : vector<8x256xf32>
    %c6 = arith.constant 6 : index
    %c0_44 = arith.constant 0 : index
    %c0_45 = arith.constant 0 : index
    %37 = vector.load %arg2[%c6, %c0_44, %c0_45] : memref<9x8x4xbf16, #tpu.memory_space<vmem>>, vector<1x8x4xbf16>
    %38 = vector.shape_cast %37 : vector<1x8x4xbf16> to vector<8x4xbf16>
    %c0_46 = arith.constant 0 : index
    %c0_47 = arith.constant 0 : index
    %c0_48 = arith.constant 0 : index
    %c32 = arith.constant 32 : index
    %39 = vector.load %arg1[%c0_46, %c0_47, %c0_48, %c32] : memref<2x3x4x288xbf16, #tpu.memory_space<vmem>>, vector<1x1x4x256xbf16>
    %40 = vector.shape_cast %39 : vector<1x1x4x256xbf16> to vector<4x256xbf16>
    %cst_49 = arith.constant dense<0.000000e+00> : vector<8x256xf32>
    %41 = tpu.matmul %38, %40, %cst_49 {dimension_numbers = #tpu.dot_dimension_numbers<[1], [0], [0], [1], [0, 0, 1, 1], [], []>} : vector<8x4xbf16>, vector<4x256xbf16>, vector<8x256xf32> -> vector<8x256xf32>
    %42 = arith.addf %36, %41 : vector<8x256xf32>
    %c7 = arith.constant 7 : index
    %c0_50 = arith.constant 0 : index
    %c0_51 = arith.constant 0 : index
    %43 = vector.load %arg2[%c7, %c0_50, %c0_51] : memref<9x8x4xbf16, #tpu.memory_space<vmem>>, vector<1x8x4xbf16>
    %44 = vector.shape_cast %43 : vector<1x8x4xbf16> to vector<8x4xbf16>
    %c0_52 = arith.constant 0 : index
    %c1_53 = arith.constant 1 : index
    %c0_54 = arith.constant 0 : index
    %c32_55 = arith.constant 32 : index
    %45 = vector.load %arg1[%c0_52, %c1_53, %c0_54, %c32_55] : memref<2x3x4x288xbf16, #tpu.memory_space<vmem>>, vector<1x1x4x256xbf16>
    %46 = vector.shape_cast %45 : vector<1x1x4x256xbf16> to vector<4x256xbf16>
    %cst_56 = arith.constant dense<0.000000e+00> : vector<8x256xf32>
    %47 = tpu.matmul %44, %46, %cst_56 {dimension_numbers = #tpu.dot_dimension_numbers<[1], [0], [0], [1], [0, 0, 1, 1], [], []>} : vector<8x4xbf16>, vector<4x256xbf16>, vector<8x256xf32> -> vector<8x256xf32>
    %48 = arith.addf %42, %47 : vector<8x256xf32>
    %c8 = arith.constant 8 : index
    %c0_57 = arith.constant 0 : index
    %c0_58 = arith.constant 0 : index
    %49 = vector.load %arg2[%c8, %c0_57, %c0_58] : memref<9x8x4xbf16, #tpu.memory_space<vmem>>, vector<1x8x4xbf16>
    %50 = vector.shape_cast %49 : vector<1x8x4xbf16> to vector<8x4xbf16>
    %c0_59 = arith.constant 0 : index
    %c2_60 = arith.constant 2 : index
    %c0_61 = arith.constant 0 : index
    %c32_62 = arith.constant 32 : index
    %51 = vector.load %arg1[%c0_59, %c2_60, %c0_61, %c32_62] : memref<2x3x4x288xbf16, #tpu.memory_space<vmem>>, vector<1x1x4x256xbf16>
    %52 = vector.shape_cast %51 : vector<1x1x4x256xbf16> to vector<4x256xbf16>
    %cst_63 = arith.constant dense<0.000000e+00> : vector<8x256xf32>
    %53 = tpu.matmul %50, %52, %cst_63 {dimension_numbers = #tpu.dot_dimension_numbers<[1], [0], [0], [1], [0, 0, 1, 1], [], []>} : vector<8x4xbf16>, vector<4x256xbf16>, vector<8x256xf32> -> vector<8x256xf32>
    %54 = arith.addf %48, %53 : vector<8x256xf32>
    %cst_64 = arith.constant dense<0.000000e+00> : vector<8xf32>
    %55 = vector.multi_reduction <add>, %54, %cst_64 [1] : vector<8x256xf32> to vector<8xf32>
    %56 = vector.shape_cast %55 : vector<8xf32> to vector<8x1xf32>
    %cst_65 = arith.constant 3.906250e-03 : f32
    %57 = vector.broadcast %cst_65 : f32 to vector<8x1xf32>
    %58 = arith.mulf %56, %57 : vector<8x1xf32>
    %59 = vector.broadcast %58 : vector<8x1xf32> to vector<8x256xf32>
    %60 = arith.subf %54, %59 : vector<8x256xf32>
    %61 = arith.mulf %60, %60 : vector<8x256xf32>
    %cst_66 = arith.constant dense<0.000000e+00> : vector<8xf32>
    %62 = vector.multi_reduction <add>, %61, %cst_66 [1] : vector<8x256xf32> to vector<8xf32>
    %63 = vector.shape_cast %62 : vector<8xf32> to vector<8x1xf32>
    %cst_67 = arith.constant 3.906250e-03 : f32
    %64 = vector.broadcast %cst_67 : f32 to vector<8x1xf32>
    %65 = arith.mulf %63, %64 : vector<8x1xf32>
    %cst_68 = arith.constant 9.99999974E-6 : f32
    %66 = vector.broadcast %cst_68 : f32 to vector<8x1xf32>
    %67 = arith.addf %65, %66 : vector<8x1xf32>
    %68 = math.rsqrt %67 : vector<8x1xf32>
    %69 = arith.mulf %68, %0 : vector<8x1xf32>
    %70 = vector.broadcast %69 : vector<8x1xf32> to vector<8x256xf32>
    %71 = arith.mulf %60, %70 : vector<8x256xf32>
    %72 = vector.broadcast %1 : vector<8x1xf32> to vector<8x256xf32>
    %73 = arith.addf %71, %72 : vector<8x256xf32>
    %cst_69 = arith.constant 0.000000e+00 : f32
    %74 = vector.broadcast %cst_69 : f32 to vector<8x256xf32>
    %75 = arith.cmpf oge, %73, %74 : vector<8x256xf32>
    %cst_70 = arith.constant 2.000000e-01 : f32
    %76 = vector.broadcast %cst_70 : f32 to vector<8x256xf32>
    %77 = arith.mulf %76, %73 : vector<8x256xf32>
    %78 = arith.select %75, %73, %77 : vector<8x256xi1>, vector<8x256xf32>
    %c0_71 = arith.constant 0 : index
    %c0_72 = arith.constant 0 : index
    %c0_73 = arith.constant 0 : index
    %79 = vector.load %arg5[%c0_71, %c0_72, %c0_73] : memref<2x8x256xf32, #tpu.memory_space<vmem>>, vector<1x8x256xf32>
    %80 = vector.shape_cast %79 : vector<1x8x256xf32> to vector<8x256xf32>
    %81 = vector.shape_cast %78 : vector<8x256xf32> to vector<1x8x256xf32>
    tpu.vector_store %arg5[%c0_71, %c0_72, %c0_73], %81 {strides = array<i32>} : memref<2x8x256xf32, #tpu.memory_space<vmem>>, vector<1x8x256xf32>,
    %c0_74 = arith.constant 0 : index
    %c0_75 = arith.constant 0 : index
    %c0_76 = arith.constant 0 : index
    %82 = vector.load %arg2[%c0_74, %c0_75, %c0_76] : memref<9x8x4xbf16, #tpu.memory_space<vmem>>, vector<1x8x4xbf16>
    %83 = vector.shape_cast %82 : vector<1x8x4xbf16> to vector<8x4xbf16>
    %c1_77 = arith.constant 1 : index
    %c0_78 = arith.constant 0 : index
    %c0_79 = arith.constant 0 : index
    %c0_80 = arith.constant 0 : index
    %84 = vector.load %arg1[%c1_77, %c0_78, %c0_79, %c0_80] : memref<2x3x4x288xbf16, #tpu.memory_space<vmem>>, vector<1x1x4x256xbf16>
    %85 = vector.shape_cast %84 : vector<1x1x4x256xbf16> to vector<4x256xbf16>
    %cst_81 = arith.constant dense<0.000000e+00> : vector<8x256xf32>
    %86 = tpu.matmul %83, %85, %cst_81 {dimension_numbers = #tpu.dot_dimension_numbers<[1], [0], [0], [1], [0, 0, 1, 1], [], []>} : vector<8x4xbf16>, vector<4x256xbf16>, vector<8x256xf32> -> vector<8x256xf32>
    %c1_82 = arith.constant 1 : index
    %c0_83 = arith.constant 0 : index
    %c0_84 = arith.constant 0 : index
    %87 = vector.load %arg2[%c1_82, %c0_83, %c0_84] : memref<9x8x4xbf16, #tpu.memory_space<vmem>>, vector<1x8x4xbf16>
    %88 = vector.shape_cast %87 : vector<1x8x4xbf16> to vector<8x4xbf16>
    %c1_85 = arith.constant 1 : index
    %c1_86 = arith.constant 1 : index
    %c0_87 = arith.constant 0 : index
    %c0_88 = arith.constant 0 : index
    %89 = vector.load %arg1[%c1_85, %c1_86, %c0_87, %c0_88] : memref<2x3x4x288xbf16, #tpu.memory_space<vmem>>, vector<1x1x4x256xbf16>
    %90 = vector.shape_cast %89 : vector<1x1x4x256xbf16> to vector<4x256xbf16>
    %cst_89 = arith.constant dense<0.000000e+00> : vector<8x256xf32>
    %91 = tpu.matmul %88, %90, %cst_89 {dimension_numbers = #tpu.dot_dimension_numbers<[1], [0], [0], [1], [0, 0, 1, 1], [], []>} : vector<8x4xbf16>, vector<4x256xbf16>, vector<8x256xf32> -> vector<8x256xf32>
    %92 = arith.addf %86, %91 : vector<8x256xf32>
    %c2_90 = arith.constant 2 : index
    %c0_91 = arith.constant 0 : index
    %c0_92 = arith.constant 0 : index
    %93 = vector.load %arg2[%c2_90, %c0_91, %c0_92] : memref<9x8x4xbf16, #tpu.memory_space<vmem>>, vector<1x8x4xbf16>
    %94 = vector.shape_cast %93 : vector<1x8x4xbf16> to vector<8x4xbf16>
    %c1_93 = arith.constant 1 : index
    %c2_94 = arith.constant 2 : index
    %c0_95 = arith.constant 0 : index
    %c0_96 = arith.constant 0 : index
    %95 = vector.load %arg1[%c1_93, %c2_94, %c0_95, %c0_96] : memref<2x3x4x288xbf16, #tpu.memory_space<vmem>>, vector<1x1x4x256xbf16>
    %96 = vector.shape_cast %95 : vector<1x1x4x256xbf16> to vector<4x256xbf16>
    %cst_97 = arith.constant dense<0.000000e+00> : vector<8x256xf32>
    %97 = tpu.matmul %94, %96, %cst_97 {dimension_numbers = #tpu.dot_dimension_numbers<[1], [0], [0], [1], [0, 0, 1, 1], [], []>} : vector<8x4xbf16>, vector<4x256xbf16>, vector<8x256xf32> -> vector<8x256xf32>
    %98 = arith.addf %92, %97 : vector<8x256xf32>
    %c3_98 = arith.constant 3 : index
    %c0_99 = arith.constant 0 : index
    %c0_100 = arith.constant 0 : index
    %99 = vector.load %arg2[%c3_98, %c0_99, %c0_100] : memref<9x8x4xbf16, #tpu.memory_space<vmem>>, vector<1x8x4xbf16>
    %100 = vector.shape_cast %99 : vector<1x8x4xbf16> to vector<8x4xbf16>
    %c1_101 = arith.constant 1 : index
    %c0_102 = arith.constant 0 : index
    %c0_103 = arith.constant 0 : index
    %c16_104 = arith.constant 16 : index
    %101 = vector.load %arg1[%c1_101, %c0_102, %c0_103, %c16_104] : memref<2x3x4x288xbf16, #tpu.memory_space<vmem>>, vector<1x1x4x256xbf16>
    %102 = vector.shape_cast %101 : vector<1x1x4x256xbf16> to vector<4x256xbf16>
    %cst_105 = arith.constant dense<0.000000e+00> : vector<8x256xf32>
    %103 = tpu.matmul %100, %102, %cst_105 {dimension_numbers = #tpu.dot_dimension_numbers<[1], [0], [0], [1], [0, 0, 1, 1], [], []>} : vector<8x4xbf16>, vector<4x256xbf16>, vector<8x256xf32> -> vector<8x256xf32>
    %104 = arith.addf %98, %103 : vector<8x256xf32>
    %c4_106 = arith.constant 4 : index
    %c0_107 = arith.constant 0 : index
    %c0_108 = arith.constant 0 : index
    %105 = vector.load %arg2[%c4_106, %c0_107, %c0_108] : memref<9x8x4xbf16, #tpu.memory_space<vmem>>, vector<1x8x4xbf16>
    %106 = vector.shape_cast %105 : vector<1x8x4xbf16> to vector<8x4xbf16>
    %c1_109 = arith.constant 1 : index
    %c1_110 = arith.constant 1 : index
    %c0_111 = arith.constant 0 : index
    %c16_112 = arith.constant 16 : index
    %107 = vector.load %arg1[%c1_109, %c1_110, %c0_111, %c16_112] : memref<2x3x4x288xbf16, #tpu.memory_space<vmem>>, vector<1x1x4x256xbf16>
    %108 = vector.shape_cast %107 : vector<1x1x4x256xbf16> to vector<4x256xbf16>
    %cst_113 = arith.constant dense<0.000000e+00> : vector<8x256xf32>
    %109 = tpu.matmul %106, %108, %cst_113 {dimension_numbers = #tpu.dot_dimension_numbers<[1], [0], [0], [1], [0, 0, 1, 1], [], []>} : vector<8x4xbf16>, vector<4x256xbf16>, vector<8x256xf32> -> vector<8x256xf32>
    %110 = arith.addf %104, %109 : vector<8x256xf32>
    %c5_114 = arith.constant 5 : index
    %c0_115 = arith.constant 0 : index
    %c0_116 = arith.constant 0 : index
    %111 = vector.load %arg2[%c5_114, %c0_115, %c0_116] : memref<9x8x4xbf16, #tpu.memory_space<vmem>>, vector<1x8x4xbf16>
    %112 = vector.shape_cast %111 : vector<1x8x4xbf16> to vector<8x4xbf16>
    %c1_117 = arith.constant 1 : index
    %c2_118 = arith.constant 2 : index
    %c0_119 = arith.constant 0 : index
    %c16_120 = arith.constant 16 : index
    %113 = vector.load %arg1[%c1_117, %c2_118, %c0_119, %c16_120] : memref<2x3x4x288xbf16, #tpu.memory_space<vmem>>, vector<1x1x4x256xbf16>
    %114 = vector.shape_cast %113 : vector<1x1x4x256xbf16> to vector<4x256xbf16>
    %cst_121 = arith.constant dense<0.000000e+00> : vector<8x256xf32>
    %115 = tpu.matmul %112, %114, %cst_121 {dimension_numbers = #tpu.dot_dimension_numbers<[1], [0], [0], [1], [0, 0, 1, 1], [], []>} : vector<8x4xbf16>, vector<4x256xbf16>, vector<8x256xf32> -> vector<8x256xf32>
    %116 = arith.addf %110, %115 : vector<8x256xf32>
    %c6_122 = arith.constant 6 : index
    %c0_123 = arith.constant 0 : index
    %c0_124 = arith.constant 0 : index
    %117 = vector.load %arg2[%c6_122, %c0_123, %c0_124] : memref<9x8x4xbf16, #tpu.memory_space<vmem>>, vector<1x8x4xbf16>
    %118 = vector.shape_cast %117 : vector<1x8x4xbf16> to vector<8x4xbf16>
    %c1_125 = arith.constant 1 : index
    %c0_126 = arith.constant 0 : index
    %c0_127 = arith.constant 0 : index
    %c32_128 = arith.constant 32 : index
    %119 = vector.load %arg1[%c1_125, %c0_126, %c0_127, %c32_128] : memref<2x3x4x288xbf16, #tpu.memory_space<vmem>>, vector<1x1x4x256xbf16>
    %120 = vector.shape_cast %119 : vector<1x1x4x256xbf16> to vector<4x256xbf16>
    %cst_129 = arith.constant dense<0.000000e+00> : vector<8x256xf32>
    %121 = tpu.matmul %118, %120, %cst_129 {dimension_numbers = #tpu.dot_dimension_numbers<[1], [0], [0], [1], [0, 0, 1, 1], [], []>} : vector<8x4xbf16>, vector<4x256xbf16>, vector<8x256xf32> -> vector<8x256xf32>
    %122 = arith.addf %116, %121 : vector<8x256xf32>
    %c7_130 = arith.constant 7 : index
    %c0_131 = arith.constant 0 : index
    %c0_132 = arith.constant 0 : index
    %123 = vector.load %arg2[%c7_130, %c0_131, %c0_132] : memref<9x8x4xbf16, #tpu.memory_space<vmem>>, vector<1x8x4xbf16>
    %124 = vector.shape_cast %123 : vector<1x8x4xbf16> to vector<8x4xbf16>
    %c1_133 = arith.constant 1 : index
    %c1_134 = arith.constant 1 : index
    %c0_135 = arith.constant 0 : index
    %c32_136 = arith.constant 32 : index
    %125 = vector.load %arg1[%c1_133, %c1_134, %c0_135, %c32_136] : memref<2x3x4x288xbf16, #tpu.memory_space<vmem>>, vector<1x1x4x256xbf16>
    %126 = vector.shape_cast %125 : vector<1x1x4x256xbf16> to vector<4x256xbf16>
    %cst_137 = arith.constant dense<0.000000e+00> : vector<8x256xf32>
    %127 = tpu.matmul %124, %126, %cst_137 {dimension_numbers = #tpu.dot_dimension_numbers<[1], [0], [0], [1], [0, 0, 1, 1], [], []>} : vector<8x4xbf16>, vector<4x256xbf16>, vector<8x256xf32> -> vector<8x256xf32>
    %128 = arith.addf %122, %127 : vector<8x256xf32>
    %c8_138 = arith.constant 8 : index
    %c0_139 = arith.constant 0 : index
    %c0_140 = arith.constant 0 : index
    %129 = vector.load %arg2[%c8_138, %c0_139, %c0_140] : memref<9x8x4xbf16, #tpu.memory_space<vmem>>, vector<1x8x4xbf16>
    %130 = vector.shape_cast %129 : vector<1x8x4xbf16> to vector<8x4xbf16>
    %c1_141 = arith.constant 1 : index
    %c2_142 = arith.constant 2 : index
    %c0_143 = arith.constant 0 : index
    %c32_144 = arith.constant 32 : index
    %131 = vector.load %arg1[%c1_141, %c2_142, %c0_143, %c32_144] : memref<2x3x4x288xbf16, #tpu.memory_space<vmem>>, vector<1x1x4x256xbf16>
    %132 = vector.shape_cast %131 : vector<1x1x4x256xbf16> to vector<4x256xbf16>
    %cst_145 = arith.constant dense<0.000000e+00> : vector<8x256xf32>
    %133 = tpu.matmul %130, %132, %cst_145 {dimension_numbers = #tpu.dot_dimension_numbers<[1], [0], [0], [1], [0, 0, 1, 1], [], []>} : vector<8x4xbf16>, vector<4x256xbf16>, vector<8x256xf32> -> vector<8x256xf32>
    %134 = arith.addf %128, %133 : vector<8x256xf32>
    %cst_146 = arith.constant dense<0.000000e+00> : vector<8xf32>
    %135 = vector.multi_reduction <add>, %134, %cst_146 [1] : vector<8x256xf32> to vector<8xf32>
    %136 = vector.shape_cast %135 : vector<8xf32> to vector<8x1xf32>
    %cst_147 = arith.constant 3.906250e-03 : f32
    %137 = vector.broadcast %cst_147 : f32 to vector<8x1xf32>
    %138 = arith.mulf %136, %137 : vector<8x1xf32>
    %139 = vector.broadcast %138 : vector<8x1xf32> to vector<8x256xf32>
    %140 = arith.subf %134, %139 : vector<8x256xf32>
    %141 = arith.mulf %140, %140 : vector<8x256xf32>
    %cst_148 = arith.constant dense<0.000000e+00> : vector<8xf32>
    %142 = vector.multi_reduction <add>, %141, %cst_148 [1] : vector<8x256xf32> to vector<8xf32>
    %143 = vector.shape_cast %142 : vector<8xf32> to vector<8x1xf32>
    %cst_149 = arith.constant 3.906250e-03 : f32
    %144 = vector.broadcast %cst_149 : f32 to vector<8x1xf32>
    %145 = arith.mulf %143, %144 : vector<8x1xf32>
    %cst_150 = arith.constant 9.99999974E-6 : f32
    %146 = vector.broadcast %cst_150 : f32 to vector<8x1xf32>
    %147 = arith.addf %145, %146 : vector<8x1xf32>
    %148 = math.rsqrt %147 : vector<8x1xf32>
    %149 = arith.mulf %148, %0 : vector<8x1xf32>
    %150 = vector.broadcast %149 : vector<8x1xf32> to vector<8x256xf32>
    %151 = arith.mulf %140, %150 : vector<8x256xf32>
    %152 = vector.broadcast %1 : vector<8x1xf32> to vector<8x256xf32>
    %153 = arith.addf %151, %152 : vector<8x256xf32>
    %cst_151 = arith.constant 0.000000e+00 : f32
    %154 = vector.broadcast %cst_151 : f32 to vector<8x256xf32>
    %155 = arith.cmpf oge, %153, %154 : vector<8x256xf32>
    %cst_152 = arith.constant 2.000000e-01 : f32
    %156 = vector.broadcast %cst_152 : f32 to vector<8x256xf32>
    %157 = arith.mulf %156, %153 : vector<8x256xf32>
    %158 = arith.select %155, %153, %157 : vector<8x256xi1>, vector<8x256xf32>
    %c1_153 = arith.constant 1 : index
    %c0_154 = arith.constant 0 : index
    %c0_155 = arith.constant 0 : index
    %159 = vector.load %arg5[%c1_153, %c0_154, %c0_155] : memref<2x8x256xf32, #tpu.memory_space<vmem>>, vector<1x8x256xf32>
    %160 = vector.shape_cast %159 : vector<1x8x256xf32> to vector<8x256xf32>
    %161 = vector.shape_cast %158 : vector<8x256xf32> to vector<1x8x256xf32>
    tpu.vector_store %arg5[%c1_153, %c0_154, %c0_155], %161 {strides = array<i32>} : memref<2x8x256xf32, #tpu.memory_space<vmem>>, vector<1x8x256xf32>,
    return
  }
  func.func @transform_0(%arg0: i32) -> (i32, i32, i32, i32) {
    %c0_i32 = arith.constant 0 : i32
    %c0_i32_0 = arith.constant 0 : i32
    %c0_i32_1 = arith.constant 0 : i32
    %c0_i32_2 = arith.constant 0 : i32
    return %arg0, %c0_i32, %c0_i32_0, %c0_i32_1 : i32, i32, i32, i32
  }
  func.func @transform_1(%arg0: i32) -> (i32, i32, i32) {
    %c0_i32 = arith.constant 0 : i32
    %c0_i32_0 = arith.constant 0 : i32
    %c0_i32_1 = arith.constant 0 : i32
    %c0_i32_2 = arith.constant 0 : i32
    return %c0_i32, %c0_i32_0, %c0_i32_1 : i32, i32, i32
  }
  func.func @transform_2(%arg0: i32) -> (i32, i32) {
    %c0_i32 = arith.constant 0 : i32
    %c0_i32_0 = arith.constant 0 : i32
    %c0_i32_1 = arith.constant 0 : i32
    return %c0_i32, %c0_i32_0 : i32, i32
  }
  func.func @transform_3(%arg0: i32) -> (i32, i32) {
    %c0_i32 = arith.constant 0 : i32
    %c0_i32_0 = arith.constant 0 : i32
    %c0_i32_1 = arith.constant 0 : i32
    return %c0_i32, %c0_i32_0 : i32, i32
  }
  func.func @transform_4(%arg0: i32) -> (i32, i32, i32) {
    %c0_i32 = arith.constant 0 : i32
    %c0_i32_0 = arith.constant 0 : i32
    %c0_i32_1 = arith.constant 0 : i32
    return %arg0, %c0_i32, %c0_i32_0 : i32, i32, i32
  }
}

</mosaic_0001>

<llo_original>
// kernel: tpu_custom_call.1
$region0: #{tpu_custom_call.1}
  #allocation0 [shape = 'u32[]', space=smem, size = 0x4, offset = 0x4, fixed_abs, tag = 'smem constant byte address 0x4 - core index']
  #allocation1 [shape = 'u32[144,128]{1,0:T(1,128)}', space=vmem, size = 0x12000, scoped, tag = 'internal scratch']
  %s0 = inlined_call_operand.vmem [shape: bf16[2,3,4,288], index: 0, kind: input, shape index: {}]
  %s1 = inlined_call_operand.vmem [shape: bf16[9,8,4], index: 1, kind: input, shape index: {}]
  %s2 = inlined_call_operand.vmem [shape: f32[8,1], index: 2, kind: input, shape index: {}]
  %s3 = inlined_call_operand.vmem [shape: f32[8,1], index: 3, kind: input, shape index: {}]
  %s4 = inlined_call_operand.hbm [shape: f32[2,8,256], index: 4, kind: output, shape index: {}]
  %s5 = sld [smem:[#allocation0]]
  $region26: #{tpu_custom_call.1} parent=0
    _
  %s7 = ssub.s32 1, %s5
  %s8 = scalar_select 0, %s7, %s5
  $region1: #{tpu_custom_call.1} parent=0
    #allocation2 [shape = 'u8[16384]{0}', space=vmem, size = 0x4000, scoped, tag = 'output window, operand 0, single buffered']
    #allocation3 [shape = 's32[1]{0}', space=sflag, size = 0x4, scoped, tag = 'scoped memory for tpu_custom_call.1']
    %9 = vsyncpa [#allocation3], 0
    // Predicated region
    $region2: #{tpu_custom_call.1} parent=1 // pred_check
      _
    $region3: #{tpu_custom_call.1} parent=1 // pred_check_branch
      %11 = sbr.rel (0) target = $region5
    $region4: #{tpu_custom_call.1} parent=1 // pred_region
      _
    $region5: #{tpu_custom_call.1} parent=1 // pred_fallthru
      _
    // Predicated region
    $region6: #{tpu_custom_call.1} parent=1 // pred_check
      _
    $region7: #{tpu_custom_call.1} parent=1 // pred_check_branch
      %13 = sbr.rel (0) target = $region9
    $region8: #{tpu_custom_call.1} parent=1 // pred_region
      _
    $region9: #{tpu_custom_call.1} parent=1 // pred_fallthru
      _
    // Predicated region
    $region10: #{tpu_custom_call.1} parent=1 // pred_check
      _
    $region11: #{tpu_custom_call.1} parent=1 // pred_check_branch
      %15 = sbr.rel (0) target = $region13
    $region12: #{tpu_custom_call.1} parent=1 // pred_region
      _
    $region13: #{tpu_custom_call.1} parent=1 // pred_fallthru
      _
    // Predicated region
    $region14: #{tpu_custom_call.1} parent=1 // pred_check
      _
    $region15: #{tpu_custom_call.1} parent=1 // pred_check_branch
      %17 = sbr.rel (0) target = $region17
    $region16: #{tpu_custom_call.1} parent=1 // pred_region
      _
    $region17: #{tpu_custom_call.1} parent=1 // pred_fallthru
      _
    %v19 = vld [vmem:[%s2] sm:$0xff]
    %v20 = vld [vmem:[%s3] sm:$0xff]
    %v21 = vld [vmem:[%s1] sm:$0xf]
    %v22 = vld [vmem:[%s0] sm:$0xf]
    %s23 = scalar_lea.vmem %s1, 4
    %v24 = vld [vmem:[%s23] sm:$0xf]
    %s25 = scalar_lea.vmem %s0, 6
    %v26 = vld [vmem:[%s25] sm:$0xf]
    %v29 = vunpack.c.l.s4 1983009808
    %v30 = vunpack.c.0.s8 %v29
    %v31 = vlaneseq
    %v32 = vshrl.u32 %v31, 7
    %v33 = vsub.s32 %v30, %v32
    %v34 = vrot.slane %v26, %v33
    %v35 = vcombine.high %v34, %v34
    %vm36 = vcmask 31744
    %v38 = vsel %vm36, %v24, 0
    %vm40 = vcmask 1041408
    %v42 = vsel %vm40, %v34, 0
    %v45 = vsel %vm40, %v35, 0
    %47 = vmatprep.subr.bf16.mxu0 0
    %48 = vmatpush1.bf16.msra.mxu0 0
    %49 = vmatprep.subr.bf16.mxu0 0
    %50 = vmatpush1.bf16.msra.mxu0 0
    %51 = vmatprep.subr.bf16.mxu0 0
    %52 = vmatpush1.bf16.msra.mxu0 0
    %53 = vmatprep.subr.bf16.mxu0 0
    %54 = vmatpush1.bf16.msra.mxu0 0
    %55 = vmatprep.subr.bf16.mxu0 0
    %56 = vmatpush1.bf16.msra.mxu0 0
    %57 = vmatprep.subr.bf16.mxu0 0
    %58 = vmatpush1.bf16.msra.mxu0 0
    %59 = vmatprep.subr.bf16.mxu0 0
    %60 = vmatpush1.bf16.msra.mxu0 0
    %61 = vmatprep.subr.bf16.mxu0 %v45
    %62 = vmatpush1.bf16.msra.mxu0 %v42
    %63 = vmatprep.subr.bf16.mxu0 0
    %64 = vmatpush2.bf16.msra.mxu0 0
    %65 = vmatprep.subr.bf16.mxu0 0
    %66 = vmatpush2.bf16.msra.mxu0 0
    %67 = vmatprep.subr.bf16.mxu0 0
    %68 = vmatpush2.bf16.msra.mxu0 0
    %69 = vmatprep.subr.bf16.mxu0 0
    %70 = vmatpush2.bf16.msra.mxu0 0
    %71 = vmatprep.subr.bf16.mxu0 0
    %72 = vmatpush2.bf16.msra.mxu0 0
    %73 = vmatprep.subr.bf16.mxu0 0
    %74 = vmatpush2.bf16.msra.mxu0 0
    %75 = vmatprep.subr.bf16.mxu0 0
    %76 = vmatpush2.bf16.msra.mxu0 0
    %77 = vmatprep.subr.bf16.mxu0 0
    %78 = vmatpush2.bf16.msra.mxu0 0
    %79 = vmatprep.mubr.bf16.mxu0 0
    %80 = vmatmul.mubr.bf16.gmra.mxu0 %v38
    %v81 = vpop.f32.mrf.mxu0
    %v82 = vadd.f32 0.0, %v81
    %v83 = vpop.f32.mrf.mxu0
    %v84 = vadd.f32 0.0, %v83
    %v85 = vpop.f32.mrf.mxu0
    %v86 = vpop.f32.mrf.mxu0
    %87 = vdwg.mxu0
    %v90 = vunpack.c.l.s4 1983009808
    %v91 = vunpack.c.0.s8 %v90
    %v92 = vlaneseq
    %v93 = vshrl.u32 %v92, 7
    %v94 = vsub.s32 %v91, %v93
    %v95 = vrot.slane %v22, %v94
    %v96 = vcombine.high %v95, %v95
    %v98 = vsel %vm36, %v21, 0
    %v101 = vsel %vm40, %v95, 0
    %v104 = vsel %vm40, %v96, 0
    %106 = vmatprep.subr.bf16.mxu0 0
    %107 = vmatpush1.bf16.msra.mxu0 0
    %108 = vmatprep.subr.bf16.mxu0 0
    %109 = vmatpush1.bf16.msra.mxu0 0
    %110 = vmatprep.subr.bf16.mxu0 0
    %111 = vmatpush1.bf16.msra.mxu0 0
    %112 = vmatprep.subr.bf16.mxu0 0
    %113 = vmatpush1.bf16.msra.mxu0 0
    %114 = vmatprep.subr.bf16.mxu0 0
    %115 = vmatpush1.bf16.msra.mxu0 0
    %116 = vmatprep.subr.bf16.mxu0 0
    %117 = vmatpush1.bf16.msra.mxu0 0
    %118 = vmatprep.subr.bf16.mxu0 0
    %119 = vmatpush1.bf16.msra.mxu0 0
    %120 = vmatprep.subr.bf16.mxu0 %v104
    %121 = vmatpush1.bf16.msra.mxu0 %v101
    %122 = vmatprep.subr.bf16.mxu0 0
    %123 = vmatpush2.bf16.msra.mxu0 0
    %124 = vmatprep.subr.bf16.mxu0 0
    %125 = vmatpush2.bf16.msra.mxu0 0
    %126 = vmatprep.subr.bf16.mxu0 0
    %127 = vmatpush2.bf16.msra.mxu0 0
    %128 = vmatprep.subr.bf16.mxu0 0
    %129 = vmatpush2.bf16.msra.mxu0 0
    %130 = vmatprep.subr.bf16.mxu0 0
    %131 = vmatpush2.bf16.msra.mxu0 0
    %132 = vmatprep.subr.bf16.mxu0 0
    %133 = vmatpush2.bf16.msra.mxu0 0
    %134 = vmatprep.subr.bf16.mxu0 0
    %135 = vmatpush2.bf16.msra.mxu0 0
    %136 = vmatprep.subr.bf16.mxu0 0
    %137 = vmatpush2.bf16.msra.mxu0 0
    %138 = vmatprep.mubr.bf16.mxu0 0
    %139 = vmatmul.mubr.bf16.gmra.mxu0 %v98
    %v140 = vpop.f32.mrf.mxu0
    %v141 = vadd.f32 %v82, %v140
    %v142 = vpop.f32.mrf.mxu0
    %v143 = vadd.f32 %v84, %v142
    %v144 = vpop.f32.mrf.mxu0
    %v145 = vpop.f32.mrf.mxu0
    %146 = vdwg.mxu0
    %s147 = scalar_lea.vmem %s1, 8
    %v148 = vld [vmem:[%s147] sm:$0xf]
    %s149 = scalar_lea.vmem %s0, 12
    %v150 = vld [vmem:[%s149] sm:$0xf]
    %v153 = vunpack.c.l.s4 1983009808
    %v154 = vunpack.c.0.s8 %v153
    %v155 = vlaneseq
    %v156 = vshrl.u32 %v155, 7
    %v157 = vsub.s32 %v154, %v156
    %v158 = vrot.slane %v150, %v157
    %v159 = vcombine.high %v158, %v158
    %v161 = vsel %vm36, %v148, 0
    %v164 = vsel %vm40, %v158, 0
    %v167 = vsel %vm40, %v159, 0
    %169 = vmatprep.subr.bf16.mxu0 0
    %170 = vmatpush1.bf16.msra.mxu0 0
    %171 = vmatprep.subr.bf16.mxu0 0
    %172 = vmatpush1.bf16.msra.mxu0 0
    %173 = vmatprep.subr.bf16.mxu0 0
    %174 = vmatpush1.bf16.msra.mxu0 0
    %175 = vmatprep.subr.bf16.mxu0 0
    %176 = vmatpush1.bf16.msra.mxu0 0
    %177 = vmatprep.subr.bf16.mxu0 0
    %178 = vmatpush1.bf16.msra.mxu0 0
    %179 = vmatprep.subr.bf16.mxu0 0
    %180 = vmatpush1.bf16.msra.mxu0 0
    %181 = vmatprep.subr.bf16.mxu0 0
    %182 = vmatpush1.bf16.msra.mxu0 0
    %183 = vmatprep.subr.bf16.mxu0 %v167
    %184 = vmatpush1.bf16.msra.mxu0 %v164
    %185 = vmatprep.subr.bf16.mxu0 0
    %186 = vmatpush2.bf16.msra.mxu0 0
    %187 = vmatprep.subr.bf16.mxu0 0
    %188 = vmatpush2.bf16.msra.mxu0 0
    %189 = vmatprep.subr.bf16.mxu0 0
    %190 = vmatpush2.bf16.msra.mxu0 0
    %191 = vmatprep.subr.bf16.mxu0 0
    %192 = vmatpush2.bf16.msra.mxu0 0
    %193 = vmatprep.subr.bf16.mxu0 0
    %194 = vmatpush2.bf16.msra.mxu0 0
    %195 = vmatprep.subr.bf16.mxu0 0
    %196 = vmatpush2.bf16.msra.mxu0 0
    %197 = vmatprep.subr.bf16.mxu0 0
    %198 = vmatpush2.bf16.msra.mxu0 0
    %199 = vmatprep.subr.bf16.mxu0 0
    %200 = vmatpush2.bf16.msra.mxu0 0
    %201 = vmatprep.mubr.bf16.mxu0 0
    %202 = vmatmul.mubr.bf16.gmra.mxu0 %v161
    %v203 = vpop.f32.mrf.mxu0
    %v204 = vadd.f32 0.0, %v203
    %v205 = vpop.f32.mrf.mxu0
    %v206 = vadd.f32 0.0, %v205
    %v207 = vpop.f32.mrf.mxu0
    %v208 = vpop.f32.mrf.mxu0
    %209 = vdwg.mxu0
    %v210 = vadd.f32 %v141, %v204
    %v211 = vadd.f32 %v143, %v206
    %s212 = scalar_lea.vmem %s1, 12
    %v213 = vld [vmem:[%s212] sm:$0xf]
    %v214 = vld [vmem:[%s0] sm:$0x3f]
    %v216 = vcombine.high %v214, %v214
    %v218 = vunpack.c.l.s4 1983009808
    %v219 = vunpack.c.0.s8 %v218
    %v220 = vlaneseq
    %v221 = vshrl.u32 %v220, 7
    %v222 = vsub.s32 %v219, %v221
    %v223 = vrot.slane %v214, %v222
    %v225 = vunpack.c.l.s4 1983009808
    %v226 = vunpack.c.0.s8 %v225
    %v227 = vlaneseq
    %v228 = vshrl.u32 %v227, 7
    %v229 = vsub.s32 %v226, %v228
    %v230 = vrot.slane %v216, %v229
    %v231 = vcombine.high %v223, %v223
    %232 = vrot.lane.b32.xlu0 %v223, 112
    %v233 = vpop.permute.xlu0 %232
    %234 = vrot.lane.b32.xlu0 %v231, 112
    %v235 = vpop.permute.xlu0 %234
    %236 = vrot.lane.b32.xlu0 %v230, 112
    %v237 = vpop.permute.xlu0 %236
    %vm238 = vcmask 916480
    %v239 = vsel %vm238, %v233, %v235
    %v240 = vsel %vm238, %v235, %v237
    %v242 = vsel %vm36, %v213, 0
    %v245 = vsel %vm40, %v239, 0
    %v248 = vsel %vm40, %v240, 0
    %250 = vmatprep.subr.bf16.mxu0 0
    %251 = vmatpush1.bf16.msra.mxu0 0
    %252 = vmatprep.subr.bf16.mxu0 0
    %253 = vmatpush1.bf16.msra.mxu0 0
    %254 = vmatprep.subr.bf16.mxu0 0
    %255 = vmatpush1.bf16.msra.mxu0 0
    %256 = vmatprep.subr.bf16.mxu0 0
    %257 = vmatpush1.bf16.msra.mxu0 0
    %258 = vmatprep.subr.bf16.mxu0 0
    %259 = vmatpush1.bf16.msra.mxu0 0
    %260 = vmatprep.subr.bf16.mxu0 0
    %261 = vmatpush1.bf16.msra.mxu0 0
    %262 = vmatprep.subr.bf16.mxu0 0
    %263 = vmatpush1.bf16.msra.mxu0 0
    %264 = vmatprep.subr.bf16.mxu0 %v248
    %265 = vmatpush1.bf16.msra.mxu0 %v245
    %266 = vmatprep.subr.bf16.mxu0 0
    %267 = vmatpush2.bf16.msra.mxu0 0
    %268 = vmatprep.subr.bf16.mxu0 0
    %269 = vmatpush2.bf16.msra.mxu0 0
    %270 = vmatprep.subr.bf16.mxu0 0
    %271 = vmatpush2.bf16.msra.mxu0 0
    %272 = vmatprep.subr.bf16.mxu0 0
    %273 = vmatpush2.bf16.msra.mxu0 0
    %274 = vmatprep.subr.bf16.mxu0 0
    %275 = vmatpush2.bf16.msra.mxu0 0
    %276 = vmatprep.subr.bf16.mxu0 0
    %277 = vmatpush2.bf16.msra.mxu0 0
    %278 = vmatprep.subr.bf16.mxu0 0
    %279 = vmatpush2.bf16.msra.mxu0 0
    %280 = vmatprep.subr.bf16.mxu0 0
    %281 = vmatpush2.bf16.msra.mxu0 0
    %282 = vmatprep.mubr.bf16.mxu0 0
    %283 = vmatmul.mubr.bf16.gmra.mxu0 %v242
    %v284 = vpop.f32.mrf.mxu0
    %v285 = vadd.f32 0.0, %v284
    %v286 = vpop.f32.mrf.mxu0
    %v287 = vadd.f32 0.0, %v286
    %v288 = vpop.f32.mrf.mxu0
    %v289 = vpop.f32.mrf.mxu0
    %290 = vdwg.mxu0
    %v291 = vadd.f32 %v210, %v285
    %v292 = vadd.f32 %v211, %v287
    %s293 = scalar_lea.vmem %s1, 16
    %v294 = vld [vmem:[%s293] sm:$0xf]
    %v295 = vld [vmem:[%s25] sm:$0x3f]
    %v297 = vcombine.high %v295, %v295
    %v299 = vunpack.c.l.s4 1983009808
    %v300 = vunpack.c.0.s8 %v299
    %v301 = vlaneseq
    %v302 = vshrl.u32 %v301, 7
    %v303 = vsub.s32 %v300, %v302
    %v304 = vrot.slane %v295, %v303
    %v306 = vunpack.c.l.s4 1983009808
    %v307 = vunpack.c.0.s8 %v306
    %v308 = vlaneseq
    %v309 = vshrl.u32 %v308, 7
    %v310 = vsub.s32 %v307, %v309
    %v311 = vrot.slane %v297, %v310
    %v312 = vcombine.high %v304, %v304
    %313 = vrot.lane.b32.xlu0 %v304, 112
    %v314 = vpop.permute.xlu0 %313
    %315 = vrot.lane.b32.xlu0 %v312, 112
    %v316 = vpop.permute.xlu0 %315
    %317 = vrot.lane.b32.xlu0 %v311, 112
    %v318 = vpop.permute.xlu0 %317
    %v319 = vsel %vm238, %v314, %v316
    %v320 = vsel %vm238, %v316, %v318
    %v322 = vsel %vm36, %v294, 0
    %v325 = vsel %vm40, %v319, 0
    %v328 = vsel %vm40, %v320, 0
    %330 = vmatprep.subr.bf16.mxu0 0
    %331 = vmatpush1.bf16.msra.mxu0 0
    %332 = vmatprep.subr.bf16.mxu0 0
    %333 = vmatpush1.bf16.msra.mxu0 0
    %334 = vmatprep.subr.bf16.mxu0 0
    %335 = vmatpush1.bf16.msra.mxu0 0
    %336 = vmatprep.subr.bf16.mxu0 0
    %337 = vmatpush1.bf16.msra.mxu0 0
    %338 = vmatprep.subr.bf16.mxu0 0
    %339 = vmatpush1.bf16.msra.mxu0 0
    %340 = vmatprep.subr.bf16.mxu0 0
    %341 = vmatpush1.bf16.msra.mxu0 0
    %342 = vmatprep.subr.bf16.mxu0 0
    %343 = vmatpush1.bf16.msra.mxu0 0
    %344 = vmatprep.subr.bf16.mxu0 %v328
    %345 = vmatpush1.bf16.msra.mxu0 %v325
    %346 = vmatprep.subr.bf16.mxu0 0
    %347 = vmatpush2.bf16.msra.mxu0 0
    %348 = vmatprep.subr.bf16.mxu0 0
    %349 = vmatpush2.bf16.msra.mxu0 0
    %350 = vmatprep.subr.bf16.mxu0 0
    %351 = vmatpush2.bf16.msra.mxu0 0
    %352 = vmatprep.subr.bf16.mxu0 0
    %353 = vmatpush2.bf16.msra.mxu0 0
    %354 = vmatprep.subr.bf16.mxu0 0
    %355 = vmatpush2.bf16.msra.mxu0 0
    %356 = vmatprep.subr.bf16.mxu0 0
    %357 = vmatpush2.bf16.msra.mxu0 0
    %358 = vmatprep.subr.bf16.mxu0 0
    %359 = vmatpush2.bf16.msra.mxu0 0
    %360 = vmatprep.subr.bf16.mxu0 0
    %361 = vmatpush2.bf16.msra.mxu0 0
    %362 = vmatprep.mubr.bf16.mxu0 0
    %363 = vmatmul.mubr.bf16.gmra.mxu0 %v322
    %v364 = vpop.f32.mrf.mxu0
    %v365 = vadd.f32 0.0, %v364
    %v366 = vpop.f32.mrf.mxu0
    %v367 = vadd.f32 0.0, %v366
    %v368 = vpop.f32.mrf.mxu0
    %v369 = vpop.f32.mrf.mxu0
    %370 = vdwg.mxu0
    %v371 = vadd.f32 %v291, %v365
    %v372 = vadd.f32 %v292, %v367
    %s373 = scalar_lea.vmem %s1, 20
    %v374 = vld [vmem:[%s373] sm:$0xf]
    %v375 = vld [vmem:[%s149] sm:$0x3f]
    %v377 = vcombine.high %v375, %v375
    %v379 = vunpack.c.l.s4 1983009808
    %v380 = vunpack.c.0.s8 %v379
    %v381 = vlaneseq
    %v382 = vshrl.u32 %v381, 7
    %v383 = vsub.s32 %v380, %v382
    %v384 = vrot.slane %v375, %v383
    %v386 = vunpack.c.l.s4 1983009808
    %v387 = vunpack.c.0.s8 %v386
    %v388 = vlaneseq
    %v389 = vshrl.u32 %v388, 7
    %v390 = vsub.s32 %v387, %v389
    %v391 = vrot.slane %v377, %v390
    %v392 = vcombine.high %v384, %v384
    %393 = vrot.lane.b32.xlu0 %v384, 112
    %v394 = vpop.permute.xlu0 %393
    %395 = vrot.lane.b32.xlu0 %v392, 112
    %v396 = vpop.permute.xlu0 %395
    %397 = vrot.lane.b32.xlu0 %v391, 112
    %v398 = vpop.permute.xlu0 %397
    %v399 = vsel %vm238, %v394, %v396
    %v400 = vsel %vm238, %v396, %v398
    %v402 = vsel %vm36, %v374, 0
    %v405 = vsel %vm40, %v399, 0
    %v408 = vsel %vm40, %v400, 0
    %410 = vmatprep.subr.bf16.mxu0 0
    %411 = vmatpush1.bf16.msra.mxu0 0
    %412 = vmatprep.subr.bf16.mxu0 0
    %413 = vmatpush1.bf16.msra.mxu0 0
    %414 = vmatprep.subr.bf16.mxu0 0
    %415 = vmatpush1.bf16.msra.mxu0 0
    %416 = vmatprep.subr.bf16.mxu0 0
    %417 = vmatpush1.bf16.msra.mxu0 0
    %418 = vmatprep.subr.bf16.mxu0 0
    %419 = vmatpush1.bf16.msra.mxu0 0
    %420 = vmatprep.subr.bf16.mxu0 0
    %421 = vmatpush1.bf16.msra.mxu0 0
    %422 = vmatprep.subr.bf16.mxu0 0
    %423 = vmatpush1.bf16.msra.mxu0 0
    %424 = vmatprep.subr.bf16.mxu0 %v408
    %425 = vmatpush1.bf16.msra.mxu0 %v405
    %426 = vmatprep.subr.bf16.mxu0 0
    %427 = vmatpush2.bf16.msra.mxu0 0
    %428 = vmatprep.subr.bf16.mxu0 0
    %429 = vmatpush2.bf16.msra.mxu0 0
    %430 = vmatprep.subr.bf16.mxu0 0
    %431 = vmatpush2.bf16.msra.mxu0 0
    %432 = vmatprep.subr.bf16.mxu0 0
    %433 = vmatpush2.bf16.msra.mxu0 0
    %434 = vmatprep.subr.bf16.mxu0 0
    %435 = vmatpush2.bf16.msra.mxu0 0
    %436 = vmatprep.subr.bf16.mxu0 0
    %437 = vmatpush2.bf16.msra.mxu0 0
    %438 = vmatprep.subr.bf16.mxu0 0
    %439 = vmatpush2.bf16.msra.mxu0 0
    %440 = vmatprep.subr.bf16.mxu0 0
    %441 = vmatpush2.bf16.msra.mxu0 0
    %442 = vmatprep.mubr.bf16.mxu0 0
    %443 = vmatmul.mubr.bf16.gmra.mxu0 %v402
    %v444 = vpop.f32.mrf.mxu0
    %v445 = vadd.f32 0.0, %v444
    %v446 = vpop.f32.mrf.mxu0
    %v447 = vadd.f32 0.0, %v446
    %v448 = vpop.f32.mrf.mxu0
    %v449 = vpop.f32.mrf.mxu0
    %450 = vdwg.mxu0
    %v451 = vadd.f32 %v371, %v445
    %v452 = vadd.f32 %v372, %v447
    %s453 = scalar_lea.vmem %s1, 24
    %v454 = vld [vmem:[%s453] sm:$0xf]
    %v455 = vld [vmem:[%s0] sm:$0x3f]
    %v457 = vcombine.high %v455, %v455
    %v459 = vunpack.c.l.s4 1983009808
    %v460 = vunpack.c.0.s8 %v459
    %v461 = vlaneseq
    %v462 = vshrl.u32 %v461, 7
    %v463 = vsub.s32 %v460, %v462
    %v464 = vrot.slane %v455, %v463
    %v466 = vunpack.c.l.s4 1983009808
    %v467 = vunpack.c.0.s8 %v466
    %v468 = vlaneseq
    %v469 = vshrl.u32 %v468, 7
    %v470 = vsub.s32 %v467, %v469
    %v471 = vrot.slane %v457, %v470
    %v472 = vcombine.high %v464, %v464
    %473 = vrot.lane.b32.xlu0 %v464, 96
    %v474 = vpop.permute.xlu0 %473
    %475 = vrot.lane.b32.xlu0 %v472, 96
    %v476 = vpop.permute.xlu0 %475
    %477 = vrot.lane.b32.xlu0 %v471, 96
    %v478 = vpop.permute.xlu0 %477
    %vm479 = vcmask 785408
    %v480 = vsel %vm479, %v474, %v476
    %v481 = vsel %vm479, %v476, %v478
    %v483 = vsel %vm36, %v454, 0
    %v486 = vsel %vm40, %v480, 0
    %v489 = vsel %vm40, %v481, 0
    %491 = vmatprep.subr.bf16.mxu0 0
    %492 = vmatpush1.bf16.msra.mxu0 0
    %493 = vmatprep.subr.bf16.mxu0 0
    %494 = vmatpush1.bf16.msra.mxu0 0
    %495 = vmatprep.subr.bf16.mxu0 0
    %496 = vmatpush1.bf16.msra.mxu0 0
    %497 = vmatprep.subr.bf16.mxu0 0
    %498 = vmatpush1.bf16.msra.mxu0 0
    %499 = vmatprep.subr.bf16.mxu0 0
    %500 = vmatpush1.bf16.msra.mxu0 0
    %501 = vmatprep.subr.bf16.mxu0 0
    %502 = vmatpush1.bf16.msra.mxu0 0
    %503 = vmatprep.subr.bf16.mxu0 0
    %504 = vmatpush1.bf16.msra.mxu0 0
    %505 = vmatprep.subr.bf16.mxu0 %v489
    %506 = vmatpush1.bf16.msra.mxu0 %v486
    %507 = vmatprep.subr.bf16.mxu0 0
    %508 = vmatpush2.bf16.msra.mxu0 0
    %509 = vmatprep.subr.bf16.mxu0 0
    %510 = vmatpush2.bf16.msra.mxu0 0
    %511 = vmatprep.subr.bf16.mxu0 0
    %512 = vmatpush2.bf16.msra.mxu0 0
    %513 = vmatprep.subr.bf16.mxu0 0
    %514 = vmatpush2.bf16.msra.mxu0 0
    %515 = vmatprep.subr.bf16.mxu0 0
    %516 = vmatpush2.bf16.msra.mxu0 0
    %517 = vmatprep.subr.bf16.mxu0 0
    %518 = vmatpush2.bf16.msra.mxu0 0
    %519 = vmatprep.subr.bf16.mxu0 0
    %520 = vmatpush2.bf16.msra.mxu0 0
    %521 = vmatprep.subr.bf16.mxu0 0
    %522 = vmatpush2.bf16.msra.mxu0 0
    %523 = vmatprep.mubr.bf16.mxu0 0
    %524 = vmatmul.mubr.bf16.gmra.mxu0 %v483
    %v525 = vpop.f32.mrf.mxu0
    %v526 = vadd.f32 0.0, %v525
    %v527 = vpop.f32.mrf.mxu0
    %v528 = vadd.f32 0.0, %v527
    %v529 = vpop.f32.mrf.mxu0
    %v530 = vpop.f32.mrf.mxu0
    %531 = vdwg.mxu0
    %v532 = vadd.f32 %v451, %v526
    %v533 = vadd.f32 %v452, %v528
    %s534 = scalar_lea.vmem %s1, 28
    %v535 = vld [vmem:[%s534] sm:$0xf]
    %v536 = vld [vmem:[%s25] sm:$0x3f]
    %v538 = vcombine.high %v536, %v536
    %v540 = vunpack.c.l.s4 1983009808
    %v541 = vunpack.c.0.s8 %v540
    %v542 = vlaneseq
    %v543 = vshrl.u32 %v542, 7
    %v544 = vsub.s32 %v541, %v543
    %v545 = vrot.slane %v536, %v544
    %v547 = vunpack.c.l.s4 1983009808
    %v548 = vunpack.c.0.s8 %v547
    %v549 = vlaneseq
    %v550 = vshrl.u32 %v549, 7
    %v551 = vsub.s32 %v548, %v550
    %v552 = vrot.slane %v538, %v551
    %v553 = vcombine.high %v545, %v545
    %554 = vrot.lane.b32.xlu0 %v545, 96
    %v555 = vpop.permute.xlu0 %554
    %556 = vrot.lane.b32.xlu0 %v553, 96
    %v557 = vpop.permute.xlu0 %556
    %558 = vrot.lane.b32.xlu0 %v552, 96
    %v559 = vpop.permute.xlu0 %558
    %v560 = vsel %vm479, %v555, %v557
    %v561 = vsel %vm479, %v557, %v559
    %v563 = vsel %vm36, %v535, 0
    %v566 = vsel %vm40, %v560, 0
    %v569 = vsel %vm40, %v561, 0
    %571 = vmatprep.subr.bf16.mxu0 0
    %572 = vmatpush1.bf16.msra.mxu0 0
    %573 = vmatprep.subr.bf16.mxu0 0
    %574 = vmatpush1.bf16.msra.mxu0 0
    %575 = vmatprep.subr.bf16.mxu0 0
    %576 = vmatpush1.bf16.msra.mxu0 0
    %577 = vmatprep.subr.bf16.mxu0 0
    %578 = vmatpush1.bf16.msra.mxu0 0
    %579 = vmatprep.subr.bf16.mxu0 0
    %580 = vmatpush1.bf16.msra.mxu0 0
    %581 = vmatprep.subr.bf16.mxu0 0
    %582 = vmatpush1.bf16.msra.mxu0 0
    %583 = vmatprep.subr.bf16.mxu0 0
    %584 = vmatpush1.bf16.msra.mxu0 0
    %585 = vmatprep.subr.bf16.mxu0 %v569
    %586 = vmatpush1.bf16.msra.mxu0 %v566
    %587 = vmatprep.subr.bf16.mxu0 0
    %588 = vmatpush2.bf16.msra.mxu0 0
    %589 = vmatprep.subr.bf16.mxu0 0
    %590 = vmatpush2.bf16.msra.mxu0 0
    %591 = vmatprep.subr.bf16.mxu0 0
    %592 = vmatpush2.bf16.msra.mxu0 0
    %593 = vmatprep.subr.bf16.mxu0 0
    %594 = vmatpush2.bf16.msra.mxu0 0
    %595 = vmatprep.subr.bf16.mxu0 0
    %596 = vmatpush2.bf16.msra.mxu0 0
    %597 = vmatprep.subr.bf16.mxu0 0
    %598 = vmatpush2.bf16.msra.mxu0 0
    %599 = vmatprep.subr.bf16.mxu0 0
    %600 = vmatpush2.bf16.msra.mxu0 0
    %601 = vmatprep.subr.bf16.mxu0 0
    %602 = vmatpush2.bf16.msra.mxu0 0
    %603 = vmatprep.mubr.bf16.mxu0 0
    %604 = vmatmul.mubr.bf16.gmra.mxu0 %v563
    %v605 = vpop.f32.mrf.mxu0
    %v606 = vadd.f32 0.0, %v605
    %v607 = vpop.f32.mrf.mxu0
    %v608 = vadd.f32 0.0, %v607
    %v609 = vpop.f32.mrf.mxu0
    %v610 = vpop.f32.mrf.mxu0
    %611 = vdwg.mxu0
    %v612 = vadd.f32 %v532, %v606
    %v613 = vadd.f32 %v533, %v608
    %s614 = scalar_lea.vmem %s1, 32
    %v615 = vld [vmem:[%s614] sm:$0xf]
    %v616 = vld [vmem:[%s149] sm:$0x3f]
    %v618 = vcombine.high %v616, %v616
    %v620 = vunpack.c.l.s4 1983009808
    %v621 = vunpack.c.0.s8 %v620
    %v622 = vlaneseq
    %v623 = vshrl.u32 %v622, 7
    %v624 = vsub.s32 %v621, %v623
    %v625 = vrot.slane %v616, %v624
    %v627 = vunpack.c.l.s4 1983009808
    %v628 = vunpack.c.0.s8 %v627
    %v629 = vlaneseq
    %v630 = vshrl.u32 %v629, 7
    %v631 = vsub.s32 %v628, %v630
    %v632 = vrot.slane %v618, %v631
    %v633 = vcombine.high %v625, %v625
    %634 = vrot.lane.b32.xlu0 %v625, 96
    %v635 = vpop.permute.xlu0 %634
    %636 = vrot.lane.b32.xlu0 %v633, 96
    %v637 = vpop.permute.xlu0 %636
    %638 = vrot.lane.b32.xlu0 %v632, 96
    %v639 = vpop.permute.xlu0 %638
    %v640 = vsel %vm479, %v635, %v637
    %v641 = vsel %vm479, %v637, %v639
    %v643 = vsel %vm36, %v615, 0
    %v646 = vsel %vm40, %v640, 0
    %v649 = vsel %vm40, %v641, 0
    %651 = vmatprep.subr.bf16.mxu0 0
    %652 = vmatpush1.bf16.msra.mxu0 0
    %653 = vmatprep.subr.bf16.mxu0 0
    %654 = vmatpush1.bf16.msra.mxu0 0
    %655 = vmatprep.subr.bf16.mxu0 0
    %656 = vmatpush1.bf16.msra.mxu0 0
    %657 = vmatprep.subr.bf16.mxu0 0
    %658 = vmatpush1.bf16.msra.mxu0 0
    %659 = vmatprep.subr.bf16.mxu0 0
    %660 = vmatpush1.bf16.msra.mxu0 0
    %661 = vmatprep.subr.bf16.mxu0 0
    %662 = vmatpush1.bf16.msra.mxu0 0
    %663 = vmatprep.subr.bf16.mxu0 0
    %664 = vmatpush1.bf16.msra.mxu0 0
    %665 = vmatprep.subr.bf16.mxu0 %v649
    %666 = vmatpush1.bf16.msra.mxu0 %v646
    %667 = vmatprep.subr.bf16.mxu0 0
    %668 = vmatpush2.bf16.msra.mxu0 0
    %669 = vmatprep.subr.bf16.mxu0 0
    %670 = vmatpush2.bf16.msra.mxu0 0
    %671 = vmatprep.subr.bf16.mxu0 0
    %672 = vmatpush2.bf16.msra.mxu0 0
    %673 = vmatprep.subr.bf16.mxu0 0
    %674 = vmatpush2.bf16.msra.mxu0 0
    %675 = vmatprep.subr.bf16.mxu0 0
    %676 = vmatpush2.bf16.msra.mxu0 0
    %677 = vmatprep.subr.bf16.mxu0 0
    %678 = vmatpush2.bf16.msra.mxu0 0
    %679 = vmatprep.subr.bf16.mxu0 0
    %680 = vmatpush2.bf16.msra.mxu0 0
    %681 = vmatprep.subr.bf16.mxu0 0
    %682 = vmatpush2.bf16.msra.mxu0 0
    %683 = vmatprep.mubr.bf16.mxu0 0
    %684 = vmatmul.mubr.bf16.gmra.mxu0 %v643
    %v685 = vpop.f32.mrf.mxu0
    %v686 = vadd.f32 0.0, %v685
    %v687 = vpop.f32.mrf.mxu0
    %v688 = vadd.f32 0.0, %v687
    %v689 = vpop.f32.mrf.mxu0
    %v690 = vpop.f32.mrf.mxu0
    %691 = vdwg.mxu0
    %v692 = vadd.f32 %v612, %v686
    %v693 = vadd.f32 %v613, %v688
    %v694 = vadd.f32 %v692, %v693
    %695 = vadd.xlane.f32.xlu0 %v694
    %v696 = vpop.xlane.xlu0 %695
    %v697 = vmul.f32 %v696, 0.00390625
    %v698 = vsub.f32 %v692, %v697
    %v699 = vsub.f32 %v693, %v697
    %v700 = vmul.f32 %v698, %v698
    %v701 = vmul.f32 %v699, %v699
    %v702 = vadd.f32 %v700, %v701
    %703 = vadd.xlane.f32.xlu0 %v702
    %v704 = vpop.xlane.xlu0 %703
    %v705 = vmul.f32 %v704, 0.00390625
    %v706 = vadd.f32 %v705, 1e-05
    %v707 = vrsqrt.pop %v706
    %v708 = vmul.f32 %v707, %v19
    %710 = vset.pattern.permute.xlu0 0
    %711 = vperm.xlu0 %710, %v708
    %v712 = vpop.permute.xlu0 %711
    %v714 = vmul.f32 %v698, %v712
    %v715 = vmul.f32 %v699, %v712
    %717 = vset.pattern.permute.xlu0 0
    %718 = vperm.xlu0 %717, %v20
    %v719 = vpop.permute.xlu0 %718
    %v721 = vadd.f32 %v714, %v719
    %v722 = vadd.f32 %v715, %v719
    %vm723 = vcmp.ge.f32.partialorder %v721, 0.0
    %vm724 = vcmp.ge.f32.partialorder %v722, 0.0
    %v725 = vmul.f32 %v721, 0.2
    %v726 = vmul.f32 %v722, 0.2
    %v727 = vsel %vm723, %v721, %v725
    %v728 = vsel %vm724, %v722, %v726
    %729 = vst [vmem:[#allocation2] sm:$0xff] %v727
    %730 = vst [vmem:[#allocation2 + $0x8] sm:$0xff] %v728
    %v731 = vld [vmem:[%s1] sm:$0xf]
    %s732 = scalar_lea.vmem %s0, 18
    %v733 = vld [vmem:[%s732] sm:$0xf]
    %v734 = vld [vmem:[%s23] sm:$0xf]
    %s735 = scalar_lea.vmem %s0, 24
    %v736 = vld [vmem:[%s735] sm:$0xf]
    %v739 = vunpack.c.l.s4 1983009808
    %v740 = vunpack.c.0.s8 %v739
    %v741 = vlaneseq
    %v742 = vshrl.u32 %v741, 7
    %v743 = vsub.s32 %v740, %v742
    %v744 = vrot.slane %v736, %v743
    %v745 = vcombine.high %v744, %v744
    %v747 = vsel %vm36, %v734, 0
    %v750 = vsel %vm40, %v744, 0
    %v753 = vsel %vm40, %v745, 0
    %755 = vmatprep.subr.bf16.mxu0 0
    %756 = vmatpush1.bf16.msra.mxu0 0
    %757 = vmatprep.subr.bf16.mxu0 0
    %758 = vmatpush1.bf16.msra.mxu0 0
    %759 = vmatprep.subr.bf16.mxu0 0
    %760 = vmatpush1.bf16.msra.mxu0 0
    %761 = vmatprep.subr.bf16.mxu0 0
    %762 = vmatpush1.bf16.msra.mxu0 0
    %763 = vmatprep.subr.bf16.mxu0 0
    %764 = vmatpush1.bf16.msra.mxu0 0
    %765 = vmatprep.subr.bf16.mxu0 0
    %766 = vmatpush1.bf16.msra.mxu0 0
    %767 = vmatprep.subr.bf16.mxu0 0
    %768 = vmatpush1.bf16.msra.mxu0 0
    %769 = vmatprep.subr.bf16.mxu0 %v753
    %770 = vmatpush1.bf16.msra.mxu0 %v750
    %771 = vmatprep.subr.bf16.mxu0 0
    %772 = vmatpush2.bf16.msra.mxu0 0
    %773 = vmatprep.subr.bf16.mxu0 0
    %774 = vmatpush2.bf16.msra.mxu0 0
    %775 = vmatprep.subr.bf16.mxu0 0
    %776 = vmatpush2.bf16.msra.mxu0 0
    %777 = vmatprep.subr.bf16.mxu0 0
    %778 = vmatpush2.bf16.msra.mxu0 0
    %779 = vmatprep.subr.bf16.mxu0 0
    %780 = vmatpush2.bf16.msra.mxu0 0
    %781 = vmatprep.subr.bf16.mxu0 0
    %782 = vmatpush2.bf16.msra.mxu0 0
    %783 = vmatprep.subr.bf16.mxu0 0
    %784 = vmatpush2.bf16.msra.mxu0 0
    %785 = vmatprep.subr.bf16.mxu0 0
    %786 = vmatpush2.bf16.msra.mxu0 0
    %787 = vmatprep.mubr.bf16.mxu0 0
    %788 = vmatmul.mubr.bf16.gmra.mxu0 %v747
    %v789 = vpop.f32.mrf.mxu0
    %v790 = vadd.f32 0.0, %v789
    %v791 = vpop.f32.mrf.mxu0
    %v792 = vadd.f32 0.0, %v791
    %v793 = vpop.f32.mrf.mxu0
    %v794 = vpop.f32.mrf.mxu0
    %795 = vdwg.mxu0
    %v798 = vunpack.c.l.s4 1983009808
    %v799 = vunpack.c.0.s8 %v798
    %v800 = vlaneseq
    %v801 = vshrl.u32 %v800, 7
    %v802 = vsub.s32 %v799, %v801
    %v803 = vrot.slane %v733, %v802
    %v804 = vcombine.high %v803, %v803
    %v806 = vsel %vm36, %v731, 0
    %v809 = vsel %vm40, %v803, 0
    %v812 = vsel %vm40, %v804, 0
    %814 = vmatprep.subr.bf16.mxu0 0
    %815 = vmatpush1.bf16.msra.mxu0 0
    %816 = vmatprep.subr.bf16.mxu0 0
    %817 = vmatpush1.bf16.msra.mxu0 0
    %818 = vmatprep.subr.bf16.mxu0 0
    %819 = vmatpush1.bf16.msra.mxu0 0
    %820 = vmatprep.subr.bf16.mxu0 0
    %821 = vmatpush1.bf16.msra.mxu0 0
    %822 = vmatprep.subr.bf16.mxu0 0
    %823 = vmatpush1.bf16.msra.mxu0 0
    %824 = vmatprep.subr.bf16.mxu0 0
    %825 = vmatpush1.bf16.msra.mxu0 0
    %826 = vmatprep.subr.bf16.mxu0 0
    %827 = vmatpush1.bf16.msra.mxu0 0
    %828 = vmatprep.subr.bf16.mxu0 %v812
    %829 = vmatpush1.bf16.msra.mxu0 %v809
    %830 = vmatprep.subr.bf16.mxu0 0
    %831 = vmatpush2.bf16.msra.mxu0 0
    %832 = vmatprep.subr.bf16.mxu0 0
    %833 = vmatpush2.bf16.msra.mxu0 0
    %834 = vmatprep.subr.bf16.mxu0 0
    %835 = vmatpush2.bf16.msra.mxu0 0
    %836 = vmatprep.subr.bf16.mxu0 0
    %837 = vmatpush2.bf16.msra.mxu0 0
    %838 = vmatprep.subr.bf16.mxu0 0
    %839 = vmatpush2.bf16.msra.mxu0 0
    %840 = vmatprep.subr.bf16.mxu0 0
    %841 = vmatpush2.bf16.msra.mxu0 0
    %842 = vmatprep.subr.bf16.mxu0 0
    %843 = vmatpush2.bf16.msra.mxu0 0
    %844 = vmatprep.subr.bf16.mxu0 0
    %845 = vmatpush2.bf16.msra.mxu0 0
    %846 = vmatprep.mubr.bf16.mxu0 0
    %847 = vmatmul.mubr.bf16.gmra.mxu0 %v806
    %v848 = vpop.f32.mrf.mxu0
    %v849 = vadd.f32 %v790, %v848
    %v850 = vpop.f32.mrf.mxu0
    %v851 = vadd.f32 %v792, %v850
    %v852 = vpop.f32.mrf.mxu0
    %v853 = vpop.f32.mrf.mxu0
    %854 = vdwg.mxu0
    %v855 = vld [vmem:[%s147] sm:$0xf]
    %s856 = scalar_lea.vmem %s0, 30
    %v857 = vld [vmem:[%s856] sm:$0xf]
    %v860 = vunpack.c.l.s4 1983009808
    %v861 = vunpack.c.0.s8 %v860
    %v862 = vlaneseq
    %v863 = vshrl.u32 %v862, 7
    %v864 = vsub.s32 %v861, %v863
    %v865 = vrot.slane %v857, %v864
    %v866 = vcombine.high %v865, %v865
    %v868 = vsel %vm36, %v855, 0
    %v871 = vsel %vm40, %v865, 0
    %v874 = vsel %vm40, %v866, 0
    %876 = vmatprep.subr.bf16.mxu0 0
    %877 = vmatpush1.bf16.msra.mxu0 0
    %878 = vmatprep.subr.bf16.mxu0 0
    %879 = vmatpush1.bf16.msra.mxu0 0
    %880 = vmatprep.subr.bf16.mxu0 0
    %881 = vmatpush1.bf16.msra.mxu0 0
    %882 = vmatprep.subr.bf16.mxu0 0
    %883 = vmatpush1.bf16.msra.mxu0 0
    %884 = vmatprep.subr.bf16.mxu0 0
    %885 = vmatpush1.bf16.msra.mxu0 0
    %886 = vmatprep.subr.bf16.mxu0 0
    %887 = vmatpush1.bf16.msra.mxu0 0
    %888 = vmatprep.subr.bf16.mxu0 0
    %889 = vmatpush1.bf16.msra.mxu0 0
    %890 = vmatprep.subr.bf16.mxu0 %v874
    %891 = vmatpush1.bf16.msra.mxu0 %v871
    %892 = vmatprep.subr.bf16.mxu0 0
    %893 = vmatpush2.bf16.msra.mxu0 0
    %894 = vmatprep.subr.bf16.mxu0 0
    %895 = vmatpush2.bf16.msra.mxu0 0
    %896 = vmatprep.subr.bf16.mxu0 0
    %897 = vmatpush2.bf16.msra.mxu0 0
    %898 = vmatprep.subr.bf16.mxu0 0
    %899 = vmatpush2.bf16.msra.mxu0 0
    %900 = vmatprep.subr.bf16.mxu0 0
    %901 = vmatpush2.bf16.msra.mxu0 0
    %902 = vmatprep.subr.bf16.mxu0 0
    %903 = vmatpush2.bf16.msra.mxu0 0
    %904 = vmatprep.subr.bf16.mxu0 0
    %905 = vmatpush2.bf16.msra.mxu0 0
    %906 = vmatprep.subr.bf16.mxu0 0
    %907 = vmatpush2.bf16.msra.mxu0 0
    %908 = vmatprep.mubr.bf16.mxu0 0
    %909 = vmatmul.mubr.bf16.gmra.mxu0 %v868
    %v910 = vpop.f32.mrf.mxu0
    %v911 = vadd.f32 0.0, %v910
    %v912 = vpop.f32.mrf.mxu0
    %v913 = vadd.f32 0.0, %v912
    %v914 = vpop.f32.mrf.mxu0
    %v915 = vpop.f32.mrf.mxu0
    %916 = vdwg.mxu0
    %v917 = vadd.f32 %v849, %v911
    %v918 = vadd.f32 %v851, %v913
    %v919 = vld [vmem:[%s212] sm:$0xf]
    %v920 = vld [vmem:[%s732] sm:$0x3f]
    %v922 = vcombine.high %v920, %v920
    %v924 = vunpack.c.l.s4 1983009808
    %v925 = vunpack.c.0.s8 %v924
    %v926 = vlaneseq
    %v927 = vshrl.u32 %v926, 7
    %v928 = vsub.s32 %v925, %v927
    %v929 = vrot.slane %v920, %v928
    %v931 = vunpack.c.l.s4 1983009808
    %v932 = vunpack.c.0.s8 %v931
    %v933 = vlaneseq
    %v934 = vshrl.u32 %v933, 7
    %v935 = vsub.s32 %v932, %v934
    %v936 = vrot.slane %v922, %v935
    %v937 = vcombine.high %v929, %v929
    %938 = vrot.lane.b32.xlu0 %v929, 112
    %v939 = vpop.permute.xlu0 %938
    %940 = vrot.lane.b32.xlu0 %v937, 112
    %v941 = vpop.permute.xlu0 %940
    %942 = vrot.lane.b32.xlu0 %v936, 112
    %v943 = vpop.permute.xlu0 %942
    %v944 = vsel %vm238, %v939, %v941
    %v945 = vsel %vm238, %v941, %v943
    %v947 = vsel %vm36, %v919, 0
    %v950 = vsel %vm40, %v944, 0
    %v953 = vsel %vm40, %v945, 0
    %955 = vmatprep.subr.bf16.mxu0 0
    %956 = vmatpush1.bf16.msra.mxu0 0
    %957 = vmatprep.subr.bf16.mxu0 0
    %958 = vmatpush1.bf16.msra.mxu0 0
    %959 = vmatprep.subr.bf16.mxu0 0
    %960 = vmatpush1.bf16.msra.mxu0 0
    %961 = vmatprep.subr.bf16.mxu0 0
    %962 = vmatpush1.bf16.msra.mxu0 0
    %963 = vmatprep.subr.bf16.mxu0 0
    %964 = vmatpush1.bf16.msra.mxu0 0
    %965 = vmatprep.subr.bf16.mxu0 0
    %966 = vmatpush1.bf16.msra.mxu0 0
    %967 = vmatprep.subr.bf16.mxu0 0
    %968 = vmatpush1.bf16.msra.mxu0 0
    %969 = vmatprep.subr.bf16.mxu0 %v953
    %970 = vmatpush1.bf16.msra.mxu0 %v950
    %971 = vmatprep.subr.bf16.mxu0 0
    %972 = vmatpush2.bf16.msra.mxu0 0
    %973 = vmatprep.subr.bf16.mxu0 0
    %974 = vmatpush2.bf16.msra.mxu0 0
    %975 = vmatprep.subr.bf16.mxu0 0
    %976 = vmatpush2.bf16.msra.mxu0 0
    %977 = vmatprep.subr.bf16.mxu0 0
    %978 = vmatpush2.bf16.msra.mxu0 0
    %979 = vmatprep.subr.bf16.mxu0 0
    %980 = vmatpush2.bf16.msra.mxu0 0
    %981 = vmatprep.subr.bf16.mxu0 0
    %982 = vmatpush2.bf16.msra.mxu0 0
    %983 = vmatprep.subr.bf16.mxu0 0
    %984 = vmatpush2.bf16.msra.mxu0 0
    %985 = vmatprep.subr.bf16.mxu0 0
    %986 = vmatpush2.bf16.msra.mxu0 0
    %987 = vmatprep.mubr.bf16.mxu0 0
    %988 = vmatmul.mubr.bf16.gmra.mxu0 %v947
    %v989 = vpop.f32.mrf.mxu0
    %v990 = vadd.f32 0.0, %v989
    %v991 = vpop.f32.mrf.mxu0
    %v992 = vadd.f32 0.0, %v991
    %v993 = vpop.f32.mrf.mxu0
    %v994 = vpop.f32.mrf.mxu0
    %995 = vdwg.mxu0
    %v996 = vadd.f32 %v917, %v990
    %v997 = vadd.f32 %v918, %v992
    %v998 = vld [vmem:[%s293] sm:$0xf]
    %v999 = vld [vmem:[%s735] sm:$0x3f]
    %v1001 = vcombine.high %v999, %v999
    %v1003 = vunpack.c.l.s4 1983009808
    %v1004 = vunpack.c.0.s8 %v1003
    %v1005 = vlaneseq
    %v1006 = vshrl.u32 %v1005, 7
    %v1007 = vsub.s32 %v1004, %v1006
    %v1008 = vrot.slane %v999, %v1007
    %v1010 = vunpack.c.l.s4 1983009808
    %v1011 = vunpack.c.0.s8 %v1010
    %v1012 = vlaneseq
    %v1013 = vshrl.u32 %v1012, 7
    %v1014 = vsub.s32 %v1011, %v1013
    %v1015 = vrot.slane %v1001, %v1014
    %v1016 = vcombine.high %v1008, %v1008
    %1017 = vrot.lane.b32.xlu0 %v1008, 112
    %v1018 = vpop.permute.xlu0 %1017
    %1019 = vrot.lane.b32.xlu0 %v1016, 112
    %v1020 = vpop.permute.xlu0 %1019
    %1021 = vrot.lane.b32.xlu0 %v1015, 112
    %v1022 = vpop.permute.xlu0 %1021
    %v1023 = vsel %vm238, %v1018, %v1020
    %v1024 = vsel %vm238, %v1020, %v1022
    %v1026 = vsel %vm36, %v998, 0
    %v1029 = vsel %vm40, %v1023, 0
    %v1032 = vsel %vm40, %v1024, 0
    %1034 = vmatprep.subr.bf16.mxu0 0
    %1035 = vmatpush1.bf16.msra.mxu0 0
    %1036 = vmatprep.subr.bf16.mxu0 0
    %1037 = vmatpush1.bf16.msra.mxu0 0
    %1038 = vmatprep.subr.bf16.mxu0 0
    %1039 = vmatpush1.bf16.msra.mxu0 0
    %1040 = vmatprep.subr.bf16.mxu0 0
    %1041 = vmatpush1.bf16.msra.mxu0 0
    %1042 = vmatprep.subr.bf16.mxu0 0
    %1043 = vmatpush1.bf16.msra.mxu0 0
    %1044 = vmatprep.subr.bf16.mxu0 0
    %1045 = vmatpush1.bf16.msra.mxu0 0
    %1046 = vmatprep.subr.bf16.mxu0 0
    %1047 = vmatpush1.bf16.msra.mxu0 0
    %1048 = vmatprep.subr.bf16.mxu0 %v1032
    %1049 = vmatpush1.bf16.msra.mxu0 %v1029
    %1050 = vmatprep.subr.bf16.mxu0 0
    %1051 = vmatpush2.bf16.msra.mxu0 0
    %1052 = vmatprep.subr.bf16.mxu0 0
    %1053 = vmatpush2.bf16.msra.mxu0 0
    %1054 = vmatprep.subr.bf16.mxu0 0
    %1055 = vmatpush2.bf16.msra.mxu0 0
    %1056 = vmatprep.subr.bf16.mxu0 0
    %1057 = vmatpush2.bf16.msra.mxu0 0
    %1058 = vmatprep.subr.bf16.mxu0 0
    %1059 = vmatpush2.bf16.msra.mxu0 0
    %1060 = vmatprep.subr.bf16.mxu0 0
    %1061 = vmatpush2.bf16.msra.mxu0 0
    %1062 = vmatprep.subr.bf16.mxu0 0
    %1063 = vmatpush2.bf16.msra.mxu0 0
    %1064 = vmatprep.subr.bf16.mxu0 0
    %1065 = vmatpush2.bf16.msra.mxu0 0
    %1066 = vmatprep.mubr.bf16.mxu0 0
    %1067 = vmatmul.mubr.bf16.gmra.mxu0 %v1026
    %v1068 = vpop.f32.mrf.mxu0
    %v1069 = vadd.f32 0.0, %v1068
    %v1070 = vpop.f32.mrf.mxu0
    %v1071 = vadd.f32 0.0, %v1070
    %v1072 = vpop.f32.mrf.mxu0
    %v1073 = vpop.f32.mrf.mxu0
    %1074 = vdwg.mxu0
    %v1075 = vadd.f32 %v996, %v1069
    %v1076 = vadd.f32 %v997, %v1071
    %v1077 = vld [vmem:[%s373] sm:$0xf]
    %v1078 = vld [vmem:[%s856] sm:$0x3f]
    %v1080 = vcombine.high %v1078, %v1078
    %v1082 = vunpack.c.l.s4 1983009808
    %v1083 = vunpack.c.0.s8 %v1082
    %v1084 = vlaneseq
    %v1085 = vshrl.u32 %v1084, 7
    %v1086 = vsub.s32 %v1083, %v1085
    %v1087 = vrot.slane %v1078, %v1086
    %v1089 = vunpack.c.l.s4 1983009808
    %v1090 = vunpack.c.0.s8 %v1089
    %v1091 = vlaneseq
    %v1092 = vshrl.u32 %v1091, 7
    %v1093 = vsub.s32 %v1090, %v1092
    %v1094 = vrot.slane %v1080, %v1093
    %v1095 = vcombine.high %v1087, %v1087
    %1096 = vrot.lane.b32.xlu0 %v1087, 112
    %v1097 = vpop.permute.xlu0 %1096
    %1098 = vrot.lane.b32.xlu0 %v1095, 112
    %v1099 = vpop.permute.xlu0 %1098
    %1100 = vrot.lane.b32.xlu0 %v1094, 112
    %v1101 = vpop.permute.xlu0 %1100
    %v1102 = vsel %vm238, %v1097, %v1099
    %v1103 = vsel %vm238, %v1099, %v1101
    %v1105 = vsel %vm36, %v1077, 0
    %v1108 = vsel %vm40, %v1102, 0
    %v1111 = vsel %vm40, %v1103, 0
    %1113 = vmatprep.subr.bf16.mxu0 0
    %1114 = vmatpush1.bf16.msra.mxu0 0
    %1115 = vmatprep.subr.bf16.mxu0 0
    %1116 = vmatpush1.bf16.msra.mxu0 0
    %1117 = vmatprep.subr.bf16.mxu0 0
    %1118 = vmatpush1.bf16.msra.mxu0 0
    %1119 = vmatprep.subr.bf16.mxu0 0
    %1120 = vmatpush1.bf16.msra.mxu0 0
    %1121 = vmatprep.subr.bf16.mxu0 0
    %1122 = vmatpush1.bf16.msra.mxu0 0
    %1123 = vmatprep.subr.bf16.mxu0 0
    %1124 = vmatpush1.bf16.msra.mxu0 0
    %1125 = vmatprep.subr.bf16.mxu0 0
    %1126 = vmatpush1.bf16.msra.mxu0 0
    %1127 = vmatprep.subr.bf16.mxu0 %v1111
    %1128 = vmatpush1.bf16.msra.mxu0 %v1108
    %1129 = vmatprep.subr.bf16.mxu0 0
    %1130 = vmatpush2.bf16.msra.mxu0 0
    %1131 = vmatprep.subr.bf16.mxu0 0
    %1132 = vmatpush2.bf16.msra.mxu0 0
    %1133 = vmatprep.subr.bf16.mxu0 0
    %1134 = vmatpush2.bf16.msra.mxu0 0
    %1135 = vmatprep.subr.bf16.mxu0 0
    %1136 = vmatpush2.bf16.msra.mxu0 0
    %1137 = vmatprep.subr.bf16.mxu0 0
    %1138 = vmatpush2.bf16.msra.mxu0 0
    %1139 = vmatprep.subr.bf16.mxu0 0
    %1140 = vmatpush2.bf16.msra.mxu0 0
    %1141 = vmatprep.subr.bf16.mxu0 0
    %1142 = vmatpush2.bf16.msra.mxu0 0
    %1143 = vmatprep.subr.bf16.mxu0 0
    %1144 = vmatpush2.bf16.msra.mxu0 0
    %1145 = vmatprep.mubr.bf16.mxu0 0
    %1146 = vmatmul.mubr.bf16.gmra.mxu0 %v1105
    %v1147 = vpop.f32.mrf.mxu0
    %v1148 = vadd.f32 0.0, %v1147
    %v1149 = vpop.f32.mrf.mxu0
    %v1150 = vadd.f32 0.0, %v1149
    %v1151 = vpop.f32.mrf.mxu0
    %v1152 = vpop.f32.mrf.mxu0
    %1153 = vdwg.mxu0
    %v1154 = vadd.f32 %v1075, %v1148
    %v1155 = vadd.f32 %v1076, %v1150
    %v1156 = vld [vmem:[%s453] sm:$0xf]
    %v1157 = vld [vmem:[%s732] sm:$0x3f]
    %v1159 = vcombine.high %v1157, %v1157
    %v1161 = vunpack.c.l.s4 1983009808
    %v1162 = vunpack.c.0.s8 %v1161
    %v1163 = vlaneseq
    %v1164 = vshrl.u32 %v1163, 7
    %v1165 = vsub.s32 %v1162, %v1164
    %v1166 = vrot.slane %v1157, %v1165
    %v1168 = vunpack.c.l.s4 1983009808
    %v1169 = vunpack.c.0.s8 %v1168
    %v1170 = vlaneseq
    %v1171 = vshrl.u32 %v1170, 7
    %v1172 = vsub.s32 %v1169, %v1171
    %v1173 = vrot.slane %v1159, %v1172
    %v1174 = vcombine.high %v1166, %v1166
    %1175 = vrot.lane.b32.xlu0 %v1166, 96
    %v1176 = vpop.permute.xlu0 %1175
    %1177 = vrot.lane.b32.xlu0 %v1174, 96
    %v1178 = vpop.permute.xlu0 %1177
    %1179 = vrot.lane.b32.xlu0 %v1173, 96
    %v1180 = vpop.permute.xlu0 %1179
    %v1181 = vsel %vm479, %v1176, %v1178
    %v1182 = vsel %vm479, %v1178, %v1180
    %v1184 = vsel %vm36, %v1156, 0
    %v1187 = vsel %vm40, %v1181, 0
    %v1190 = vsel %vm40, %v1182, 0
    %1192 = vmatprep.subr.bf16.mxu0 0
    %1193 = vmatpush1.bf16.msra.mxu0 0
    %1194 = vmatprep.subr.bf16.mxu0 0
    %1195 = vmatpush1.bf16.msra.mxu0 0
    %1196 = vmatprep.subr.bf16.mxu0 0
    %1197 = vmatpush1.bf16.msra.mxu0 0
    %1198 = vmatprep.subr.bf16.mxu0 0
    %1199 = vmatpush1.bf16.msra.mxu0 0
    %1200 = vmatprep.subr.bf16.mxu0 0
    %1201 = vmatpush1.bf16.msra.mxu0 0
    %1202 = vmatprep.subr.bf16.mxu0 0
    %1203 = vmatpush1.bf16.msra.mxu0 0
    %1204 = vmatprep.subr.bf16.mxu0 0
    %1205 = vmatpush1.bf16.msra.mxu0 0
    %1206 = vmatprep.subr.bf16.mxu0 %v1190
    %1207 = vmatpush1.bf16.msra.mxu0 %v1187
    %1208 = vmatprep.subr.bf16.mxu0 0
    %1209 = vmatpush2.bf16.msra.mxu0 0
    %1210 = vmatprep.subr.bf16.mxu0 0
    %1211 = vmatpush2.bf16.msra.mxu0 0
    %1212 = vmatprep.subr.bf16.mxu0 0
    %1213 = vmatpush2.bf16.msra.mxu0 0
    %1214 = vmatprep.subr.bf16.mxu0 0
    %1215 = vmatpush2.bf16.msra.mxu0 0
    %1216 = vmatprep.subr.bf16.mxu0 0
    %1217 = vmatpush2.bf16.msra.mxu0 0
    %1218 = vmatprep.subr.bf16.mxu0 0
    %1219 = vmatpush2.bf16.msra.mxu0 0
    %1220 = vmatprep.subr.bf16.mxu0 0
    %1221 = vmatpush2.bf16.msra.mxu0 0
    %1222 = vmatprep.subr.bf16.mxu0 0
    %1223 = vmatpush2.bf16.msra.mxu0 0
    %1224 = vmatprep.mubr.bf16.mxu0 0
    %1225 = vmatmul.mubr.bf16.gmra.mxu0 %v1184
    %v1226 = vpop.f32.mrf.mxu0
    %v1227 = vadd.f32 0.0, %v1226
    %v1228 = vpop.f32.mrf.mxu0
    %v1229 = vadd.f32 0.0, %v1228
    %v1230 = vpop.f32.mrf.mxu0
    %v1231 = vpop.f32.mrf.mxu0
    %1232 = vdwg.mxu0
    %v1233 = vadd.f32 %v1154, %v1227
    %v1234 = vadd.f32 %v1155, %v1229
    %v1235 = vld [vmem:[%s534] sm:$0xf]
    %v1236 = vld [vmem:[%s735] sm:$0x3f]
    %v1238 = vcombine.high %v1236, %v1236
    %v1240 = vunpack.c.l.s4 1983009808
    %v1241 = vunpack.c.0.s8 %v1240
    %v1242 = vlaneseq
    %v1243 = vshrl.u32 %v1242, 7
    %v1244 = vsub.s32 %v1241, %v1243
    %v1245 = vrot.slane %v1236, %v1244
    %v1247 = vunpack.c.l.s4 1983009808
    %v1248 = vunpack.c.0.s8 %v1247
    %v1249 = vlaneseq
    %v1250 = vshrl.u32 %v1249, 7
    %v1251 = vsub.s32 %v1248, %v1250
    %v1252 = vrot.slane %v1238, %v1251
    %v1253 = vcombine.high %v1245, %v1245
    %1254 = vrot.lane.b32.xlu0 %v1245, 96
    %v1255 = vpop.permute.xlu0 %1254
    %1256 = vrot.lane.b32.xlu0 %v1253, 96
    %v1257 = vpop.permute.xlu0 %1256
    %1258 = vrot.lane.b32.xlu0 %v1252, 96
    %v1259 = vpop.permute.xlu0 %1258
    %v1260 = vsel %vm479, %v1255, %v1257
    %v1261 = vsel %vm479, %v1257, %v1259
    %v1263 = vsel %vm36, %v1235, 0
    %v1266 = vsel %vm40, %v1260, 0
    %v1269 = vsel %vm40, %v1261, 0
    %1271 = vmatprep.subr.bf16.mxu0 0
    %1272 = vmatpush1.bf16.msra.mxu0 0
    %1273 = vmatprep.subr.bf16.mxu0 0
    %1274 = vmatpush1.bf16.msra.mxu0 0
    %1275 = vmatprep.subr.bf16.mxu0 0
    %1276 = vmatpush1.bf16.msra.mxu0 0
    %1277 = vmatprep.subr.bf16.mxu0 0
    %1278 = vmatpush1.bf16.msra.mxu0 0
    %1279 = vmatprep.subr.bf16.mxu0 0
    %1280 = vmatpush1.bf16.msra.mxu0 0
    %1281 = vmatprep.subr.bf16.mxu0 0
    %1282 = vmatpush1.bf16.msra.mxu0 0
    %1283 = vmatprep.subr.bf16.mxu0 0
    %1284 = vmatpush1.bf16.msra.mxu0 0
    %1285 = vmatprep.subr.bf16.mxu0 %v1269
    %1286 = vmatpush1.bf16.msra.mxu0 %v1266
    %1287 = vmatprep.subr.bf16.mxu0 0
    %1288 = vmatpush2.bf16.msra.mxu0 0
    %1289 = vmatprep.subr.bf16.mxu0 0
    %1290 = vmatpush2.bf16.msra.mxu0 0
    %1291 = vmatprep.subr.bf16.mxu0 0
    %1292 = vmatpush2.bf16.msra.mxu0 0
    %1293 = vmatprep.subr.bf16.mxu0 0
    %1294 = vmatpush2.bf16.msra.mxu0 0
    %1295 = vmatprep.subr.bf16.mxu0 0
    %1296 = vmatpush2.bf16.msra.mxu0 0
    %1297 = vmatprep.subr.bf16.mxu0 0
    %1298 = vmatpush2.bf16.msra.mxu0 0
    %1299 = vmatprep.subr.bf16.mxu0 0
    %1300 = vmatpush2.bf16.msra.mxu0 0
    %1301 = vmatprep.subr.bf16.mxu0 0
    %1302 = vmatpush2.bf16.msra.mxu0 0
    %1303 = vmatprep.mubr.bf16.mxu0 0
    %1304 = vmatmul.mubr.bf16.gmra.mxu0 %v1263
    %v1305 = vpop.f32.mrf.mxu0
    %v1306 = vadd.f32 0.0, %v1305
    %v1307 = vpop.f32.mrf.mxu0
    %v1308 = vadd.f32 0.0, %v1307
    %v1309 = vpop.f32.mrf.mxu0
    %v1310 = vpop.f32.mrf.mxu0
    %1311 = vdwg.mxu0
    %v1312 = vadd.f32 %v1233, %v1306
    %v1313 = vadd.f32 %v1234, %v1308
    %v1314 = vld [vmem:[%s614] sm:$0xf]
    %v1315 = vld [vmem:[%s856] sm:$0x3f]
    %v1317 = vcombine.high %v1315, %v1315
    %v1319 = vunpack.c.l.s4 1983009808
    %v1320 = vunpack.c.0.s8 %v1319
    %v1321 = vlaneseq
    %v1322 = vshrl.u32 %v1321, 7
    %v1323 = vsub.s32 %v1320, %v1322
    %v1324 = vrot.slane %v1315, %v1323
    %v1326 = vunpack.c.l.s4 1983009808
    %v1327 = vunpack.c.0.s8 %v1326
    %v1328 = vlaneseq
    %v1329 = vshrl.u32 %v1328, 7
    %v1330 = vsub.s32 %v1327, %v1329
    %v1331 = vrot.slane %v1317, %v1330
    %v1332 = vcombine.high %v1324, %v1324
    %1333 = vrot.lane.b32.xlu0 %v1324, 96
    %v1334 = vpop.permute.xlu0 %1333
    %1335 = vrot.lane.b32.xlu0 %v1332, 96
    %v1336 = vpop.permute.xlu0 %1335
    %1337 = vrot.lane.b32.xlu0 %v1331, 96
    %v1338 = vpop.permute.xlu0 %1337
    %v1339 = vsel %vm479, %v1334, %v1336
    %v1340 = vsel %vm479, %v1336, %v1338
    %v1342 = vsel %vm36, %v1314, 0
    %v1345 = vsel %vm40, %v1339, 0
    %v1348 = vsel %vm40, %v1340, 0
    %1350 = vmatprep.subr.bf16.mxu0 0
    %1351 = vmatpush1.bf16.msra.mxu0 0
    %1352 = vmatprep.subr.bf16.mxu0 0
    %1353 = vmatpush1.bf16.msra.mxu0 0
    %1354 = vmatprep.subr.bf16.mxu0 0
    %1355 = vmatpush1.bf16.msra.mxu0 0
    %1356 = vmatprep.subr.bf16.mxu0 0
    %1357 = vmatpush1.bf16.msra.mxu0 0
    %1358 = vmatprep.subr.bf16.mxu0 0
    %1359 = vmatpush1.bf16.msra.mxu0 0
    %1360 = vmatprep.subr.bf16.mxu0 0
    %1361 = vmatpush1.bf16.msra.mxu0 0
    %1362 = vmatprep.subr.bf16.mxu0 0
    %1363 = vmatpush1.bf16.msra.mxu0 0
    %1364 = vmatprep.subr.bf16.mxu0 %v1348
    %1365 = vmatpush1.bf16.msra.mxu0 %v1345
    %1366 = vmatprep.subr.bf16.mxu0 0
    %1367 = vmatpush2.bf16.msra.mxu0 0
    %1368 = vmatprep.subr.bf16.mxu0 0
    %1369 = vmatpush2.bf16.msra.mxu0 0
    %1370 = vmatprep.subr.bf16.mxu0 0
    %1371 = vmatpush2.bf16.msra.mxu0 0
    %1372 = vmatprep.subr.bf16.mxu0 0
    %1373 = vmatpush2.bf16.msra.mxu0 0
    %1374 = vmatprep.subr.bf16.mxu0 0
    %1375 = vmatpush2.bf16.msra.mxu0 0
    %1376 = vmatprep.subr.bf16.mxu0 0
    %1377 = vmatpush2.bf16.msra.mxu0 0
    %1378 = vmatprep.subr.bf16.mxu0 0
    %1379 = vmatpush2.bf16.msra.mxu0 0
    %1380 = vmatprep.subr.bf16.mxu0 0
    %1381 = vmatpush2.bf16.msra.mxu0 0
    %1382 = vmatprep.mubr.bf16.mxu0 0
    %1383 = vmatmul.mubr.bf16.gmra.mxu0 %v1342
    %v1384 = vpop.f32.mrf.mxu0
    %v1385 = vadd.f32 0.0, %v1384
    %v1386 = vpop.f32.mrf.mxu0
    %v1387 = vadd.f32 0.0, %v1386
    %v1388 = vpop.f32.mrf.mxu0
    %v1389 = vpop.f32.mrf.mxu0
    %1390 = vdwg.mxu0
    %v1391 = vadd.f32 %v1312, %v1385
    %v1392 = vadd.f32 %v1313, %v1387
    %v1393 = vadd.f32 %v1391, %v1392
    %1394 = vadd.xlane.f32.xlu0 %v1393
    %v1395 = vpop.xlane.xlu0 %1394
    %v1396 = vmul.f32 %v1395, 0.00390625
    %v1397 = vsub.f32 %v1391, %v1396
    %v1398 = vsub.f32 %v1392, %v1396
    %v1399 = vmul.f32 %v1397, %v1397
    %v1400 = vmul.f32 %v1398, %v1398
    %v1401 = vadd.f32 %v1399, %v1400
    %1402 = vadd.xlane.f32.xlu0 %v1401
    %v1403 = vpop.xlane.xlu0 %1402
    %v1404 = vmul.f32 %v1403, 0.00390625
    %v1405 = vadd.f32 %v1404, 1e-05
    %v1406 = vrsqrt.pop %v1405
    %v1407 = vmul.f32 %v1406, %v19
    %1409 = vset.pattern.permute.xlu0 0
    %1410 = vperm.xlu0 %1409, %v1407
    %v1411 = vpop.permute.xlu0 %1410
    %v1413 = vmul.f32 %v1397, %v1411
    %v1414 = vmul.f32 %v1398, %v1411
    %v1415 = vadd.f32 %v1413, %v719
    %v1416 = vadd.f32 %v1414, %v719
    %vm1417 = vcmp.ge.f32.partialorder %v1415, 0.0
    %vm1418 = vcmp.ge.f32.partialorder %v1416, 0.0
    %v1419 = vmul.f32 %v1415, 0.2
    %v1420 = vmul.f32 %v1416, 0.2
    %v1421 = vsel %vm1417, %v1415, %v1419
    %v1422 = vsel %vm1418, %v1416, %v1420
    %s1423 = scalar_lea.vmem [#allocation2], 16
    %1424 = vst [vmem:[%s1423] sm:$0xff] %v1421
    %1425 = vst [vmem:[%s1423 + $0x8] sm:$0xff] %v1422
    // Predicated region
    $region18: #{tpu_custom_call.1} parent=1 // pred_check
      _
    $region19: #{tpu_custom_call.1} parent=1 // pred_check_branch
      %1427 = sbr.rel (0) target = $region21
    $region20: #{tpu_custom_call.1} parent=1 // pred_region
      %s1429 = ssub.s32 512, 512
      %1430 = vsyncadd [#allocation3], %s1429
      %s1431 = sshll.u32 [#allocation2], 4
      %s1432 = int_to_ptr.vmem [resolvable:$true] %s1431
      %1437 = dma.vmem_to_hbm [thread:$0]  %s1432, 512, %s4, [#allocation3], 256, 256, 16
    $region21: #{tpu_custom_call.1} parent=1 // pred_fallthru
      _
    // Predicated region
    $region22: #{tpu_custom_call.1} parent=1 // pred_check
      _
    $region23: #{tpu_custom_call.1} parent=1 // pred_check_branch
      %1439 = sbr.rel (0) target = $region25
    $region24: #{tpu_custom_call.1} parent=1 // pred_region
      %1440 = dma.done [#allocation3], 512
    $region25: #{tpu_custom_call.1} parent=1 // pred_fallthru
      _
    %1441 = vsyncpa [#allocation3], 1

</llo_original>
